<compile_context>
chip_gen: v7x
topology: tpu7x:2x2x1
jax: 0.10.0
libtpu: 0.0.40
codegen_flags: <defaults>
</compile_context>

<pallas_src>
import functools

import jax
import jax.numpy as jnp
from jax import lax
from jax.experimental import pallas as pl
from jax.experimental.pallas import tpu as pltpu

SLAB = 256   # inner column-slab width (lanes); bounds the per-slab vreg live set


# ----------------------------- Pallas kernel -------------------------------

def _pinn_kernel(x_ref,                      # (2, TM)  transposed inputs
                 w0_ref, b0_ref,             # (H, 2), (H, 1)
                 w1_ref, b1_ref,             # (H, H), (H, 1)
                 w2_ref, b2_ref,             # (H, H), (H, 1)
                 w3_ref, b3_ref,             # (1, H), (1, 1)
                 o_ref,                      # (1, TM)
                 *, n_slabs, use_bf16_tanh):
    # Weights/biases have constant index maps -> resident blocks, loaded once
    # per grid step (small: ~34 KiB total, 8 vregs for w1+w2).
    w0 = w0_ref[...]                 # (H, 2)
    w0t = w0[:, 0:1]                 # (H, 1) column multiplying t
    w0x = w0[:, 1:2]                 # (H, 1) column multiplying x
    b0 = b0_ref[...]                 # (H, 1)
    w1 = w1_ref[...]                 # (H, H)
    b1 = b1_ref[...]
    w2 = w2_ref[...]
    b2 = b2_ref[...]
    w3 = w3_ref[...]                 # (1, H)
    # b3 is tiny: hoist its lane-broadcast out of the slab loop (2 vregs live).
    b3 = jnp.broadcast_to(b3_ref[...], (1, SLAB))

    def act(z):
        # Optional bf16 EUP path (v6e/v7x only benefit): halves tanh pushes.
        # Off by default -- re-validate against the tolerance before enabling.
        if use_bf16_tanh:
            return jnp.tanh(z.astype(jnp.bfloat16)).astype(jnp.float32)
        return jnp.tanh(z)

    def slab(j, carry):
        col = pl.multiple_of(j * SLAB, SLAB)
        xs = x_ref[:, pl.ds(col, SLAB)]          # (2, SLAB)
        t_row = xs[0:1, :]                       # (1, SLAB)
        x_row = xs[1:2, :]                       # (1, SLAB)

        # layer 0: 2 -> H as two rank-1 VPU updates (K=2 would waste the MXU).
        z0 = w0t * t_row + w0x * x_row + b0      # (H, SLAB)
        a1 = act(z0)

        # layer 2: H -> H, tanh + residual (MXU: (H,H) @ (H,SLAB)).
        a2 = act(jnp.dot(w1, a1, preferred_element_type=jnp.float32) + b1) + a1
        # layer 4: H -> H, tanh + residual.
        a3 = act(jnp.dot(w2, a2, preferred_element_type=jnp.float32) + b2) + a2

        # layer 6: H -> 1 on the MXU -> lane-dense (1, SLAB) row, unmasked store.
        out = jnp.dot(w3, a3, preferred_element_type=jnp.float32) + b3
        o_ref[:, pl.ds(col, SLAB)] = out.astype(o_ref.dtype)
        return carry

    # Inner unrolled loop over 256-lane slabs: bounds activation live ranges
    # (16 vregs per a_i instead of 64 at the full 1024-lane tile) so nothing
    # spills, while the outer grid tile stays large enough to amortize the
    # per-step pipeline overhead.  The (H,1) bias / w0-column lane-broadcasts
    # deliberately stay inside the loop: hoisting them to (H, SLAB) would pin
    # ~80 vregs live across the loop and reintroduce exactly the spills the
    # chunking removes.
    lax.fori_loop(0, n_slabs, slab, 0, unroll=True)


# ------------------------------ wrapper -------------------------------------

def _choose_tile(n, max_tile):
    n_lanes = pl.cdiv(n, SLAB) * SLAB        # pad batch to a whole slab
    return min(n_lanes, max_tile)


@functools.partial(jax.jit, static_argnames=("max_tile", "use_bf16_tanh"))
def pinn_forward(x, params, *, max_tile=1024, use_bf16_tanh=False):
    """x: (N, 2) float32  ->  (N, 1) float32."""
    assert max_tile % SLAB == 0
    N = x.shape[0]
    H = params["w1"].shape[0]

    tile_m = _choose_tile(N, max_tile)       # multiple of SLAB, <= max_tile
    n_pad = pl.cdiv(N, tile_m) * tile_m

    xt = jnp.transpose(x).astype(jnp.float32)          # (2, N)  batch on lanes
    if n_pad != N:
        xt = jnp.pad(xt, ((0, 0), (0, n_pad - N)))      # lane padding (zeros)

    grid = (n_pad // tile_m,)
    rep = lambda i: (0, 0)   # weights/biases: same full block every grid step
    # (Resident blocks are not re-DMA'd across steps; explicit
    #  pipeline_mode=pl.Buffered(1) was skipped as a version-sensitive,
    #  ~40 KiB-only win.)

    # Advisory cost hint so XLA schedules the custom call sensibly relative to
    # the surrounding transpose/pad/concat ops.
    flops = n_pad * (4 * H + 4 * H * H + 2 * H + 4 * H)      # ~16.8k / element
    cost = pl.CostEstimate(
        flops=int(flops),
        transcendentals=int(n_pad * 3 * H),
        bytes_accessed=int(12 * n_pad + 4 * (2 * H * H + 7 * H + 1)),
    )

    kernel = functools.partial(
        _pinn_kernel, n_slabs=tile_m // SLAB, use_bf16_tanh=use_bf16_tanh)

    out_t = pl.pallas_call(
        kernel,
        out_shape=jax.ShapeDtypeStruct((1, n_pad), jnp.float32),
        grid_spec=pltpu.PrefetchScalarGridSpec(
            num_scalar_prefetch=0,
            grid=grid,
            in_specs=[
                pl.BlockSpec((2, tile_m), lambda i: (0, i)),
                pl.BlockSpec((H, 2), rep), pl.BlockSpec((H, 1), rep),
                pl.BlockSpec((H, H), rep), pl.BlockSpec((H, 1), rep),
                pl.BlockSpec((H, H), rep), pl.BlockSpec((H, 1), rep),
                pl.BlockSpec((1, H), rep), pl.BlockSpec((1, 1), rep),
            ],
            out_specs=pl.BlockSpec((1, tile_m), lambda i: (0, i)),
        ),
        compiler_params=pltpu.CompilerParams(
            dimension_semantics=("parallel",),   # v7x: shards steps across TCs
        ),
        cost_estimate=cost,
    )(xt,
      params["w0"], params["b0"],
      params["w1"], params["b1"],
      params["w2"], params["b2"],
      params["w3"], params["b3"])

    return out_t[0, :N].reshape(N, 1)


# ------------------------ parameter construction ---------------------------

def init_pinn_params(key, layers=(2, 64, 64, 64, 1)):
    """Deterministic init mirroring the PyTorch module's factorized weights.

    For each linear layer i: W (out, in), b (out,);
      s = exp(1.0 + Normal(mean=1.0, std=0.1, size=(in,)))
      v = W / s
      kernel = s * v          (== W at init, built through the factorization)

    Stored in the kernel's feature-major layout: all kernels (out, in)
    (last layer is (1, H)); biases as (out, 1).
    """
    params = {}
    sizes = list(zip(layers[:-1], layers[1:]))
    keys = jax.random.split(key, len(sizes) * 3)
    for li, (fan_in, fan_out) in enumerate(sizes):
        kw, kb, ks = keys[3 * li], keys[3 * li + 1], keys[3 * li + 2]
        bound = 1.0 / jnp.sqrt(jnp.float32(fan_in))   # PyTorch nn.Linear default
        w = jax.random.uniform(kw, (fan_out, fan_in), jnp.float32, -bound, bound)
        b = jax.random.uniform(kb, (fan_out,), jnp.float32, -bound, bound)
        s = jnp.exp(1.0 + (1.0 + 0.1 * jax.random.normal(ks, (fan_in,), jnp.float32)))
        v = w / s
        kernel = s * v                                # (out, in) == w at init
        params[f"w{li}"] = kernel
        params[f"b{li}"] = b.reshape(fan_out, 1)      # (out, 1)
    return params


def network_prediction(t, x, params):
    """Equivalent of PINN.network_prediction: forward(cat((t, x), dim=1))."""
    X = jnp.concatenate([t, x], axis=1).astype(jnp.float32)   # (N, 2)
    return pinn_forward(X, params)


def _reference_forward(X, params):
    hp = lax.Precision.HIGHEST
    a1 = jnp.tanh(jnp.dot(X, params["w0"].T, precision=hp) + params["b0"].T)
    a2 = jnp.tanh(jnp.dot(a1, params["w1"].T, precision=hp) + params["b1"].T) + a1
    a3 = jnp.tanh(jnp.dot(a2, params["w2"].T, precision=hp) + params["b2"].T) + a2
    return jnp.dot(a3, params["w3"].T, precision=hp) + params["b3"].T


# --------------------------------- main -------------------------------------

if __name__ == "__main__":
    key = jax.random.PRNGKey(0)
    k_params, k_t, k_x = jax.random.split(key, 3)

    params = init_pinn_params(k_params, layers=(2, 64, 64, 64, 1))

    # Non-multiple-of-tile N exercises the padding path; with tile_m=1024 this
    # gives 2 parallel grid steps (both TensorCores busy on v7x), each running
    # 4 unrolled 256-lane slabs internally.
    N = 2000
    t = jax.random.uniform(k_t, (N, 1), jnp.float32, 0.0, 5.0)
    x = jax.random.uniform(k_x, (N, 1), jnp.float32, -5.0, 5.0)

    y = network_prediction(t, x, params)
    y = jax.block_until_ready(y)

    # correctness check vs. plain-JAX reference of the same math
    X = jnp.concatenate([t, x], axis=1)
    y_ref = _reference_forward(X, params)
    assert y.shape == (N, 1)
    err = float(jnp.max(jnp.abs(y - y_ref)))
    assert jnp.allclose(y, y_ref, atol=2e-4, rtol=2e-4), err

    # smaller, heavily padded case (single grid step, single slab)
    N2 = 200
    y2 = jax.block_until_ready(network_prediction(t[:N2], x[:N2], params))
    y2_ref = _reference_forward(jnp.concatenate([t[:N2], x[:N2]], axis=1), params)
    assert y2.shape == (N2, 1)
    assert jnp.allclose(y2, y2_ref, atol=2e-4, rtol=2e-4)

    # TODO(synk): PDE_prediction / loss terms need autodiff wrt inputs (torch.autograd.grad);
    #             only the forward-pass hot path is implemented in Pallas here.
    print("KERNEL_OK")
</pallas_src>

<mosaic_0001>
module attributes {stable_mosaic.version = 11 : i64} {
  func.func @_pinn_kernel(%arg0: i32, %arg1: memref<2x1024xf32, #tpu.memory_space<vmem>>, %arg2: memref<64x2xf32, #tpu.memory_space<vmem>>, %arg3: memref<64x1xf32, #tpu.memory_space<vmem>>, %arg4: memref<64x64xf32, #tpu.memory_space<vmem>>, %arg5: memref<64x1xf32, #tpu.memory_space<vmem>>, %arg6: memref<64x64xf32, #tpu.memory_space<vmem>>, %arg7: memref<64x1xf32, #tpu.memory_space<vmem>>, %arg8: memref<1x64xf32, #tpu.memory_space<vmem>>, %arg9: memref<1x1xf32, #tpu.memory_space<vmem>>, %arg10: memref<1x1024xf32, #tpu.memory_space<vmem>>) attributes {dimension_semantics = [#tpu.dimension_semantics<parallel>], iteration_bounds = array<i64: 2>, scalar_prefetch = 0 : i64, scratch_operands = 0 : i64, tpu.core_type = #tpu.core_type<tc>, window_params = [{transform_indices = @transform_0, window_bounds = array<i64: 2, 1024>}, {pipeline_mode = #tpu.pipeline_mode<synchronous>, transform_indices = @transform_1, window_bounds = array<i64: 64, 2>}, {pipeline_mode = #tpu.pipeline_mode<synchronous>, transform_indices = @transform_2, window_bounds = array<i64: 64, 1>}, {pipeline_mode = #tpu.pipeline_mode<synchronous>, transform_indices = @transform_3, window_bounds = array<i64: 64, 64>}, {pipeline_mode = #tpu.pipeline_mode<synchronous>, transform_indices = @transform_4, window_bounds = array<i64: 64, 1>}, {pipeline_mode = #tpu.pipeline_mode<synchronous>, transform_indices = @transform_5, window_bounds = array<i64: 64, 64>}, {pipeline_mode = #tpu.pipeline_mode<synchronous>, transform_indices = @transform_6, window_bounds = array<i64: 64, 1>}, {pipeline_mode = #tpu.pipeline_mode<synchronous>, transform_indices = @transform_7, window_bounds = array<i64: 1, 64>}, {pipeline_mode = #tpu.pipeline_mode<synchronous>, transform_indices = @transform_8, window_bounds = array<i64: 1, 1>}, {transform_indices = @transform_9, window_bounds = array<i64: 1, 1024>}]} {
    %c0 = arith.constant 0 : index
    %c0_0 = arith.constant 0 : index
    %0 = vector.load %arg2[%c0, %c0_0] : memref<64x2xf32, #tpu.memory_space<vmem>>, vector<64x2xf32>
    %1 = vector.extract_strided_slice %0 {offsets = [0, 0], sizes = [64, 1], strides = [1, 1]} : vector<64x2xf32> to vector<64x1xf32>
    %2 = vector.extract_strided_slice %0 {offsets = [0, 1], sizes = [64, 1], strides = [1, 1]} : vector<64x2xf32> to vector<64x1xf32>
    %c0_1 = arith.constant 0 : index
    %c0_2 = arith.constant 0 : index
    %3 = vector.load %arg3[%c0_1, %c0_2] : memref<64x1xf32, #tpu.memory_space<vmem>>, vector<64x1xf32>
    %c0_3 = arith.constant 0 : index
    %c0_4 = arith.constant 0 : index
    %4 = vector.load %arg4[%c0_3, %c0_4] : memref<64x64xf32, #tpu.memory_space<vmem>>, vector<64x64xf32>
    %c0_5 = arith.constant 0 : index
    %c0_6 = arith.constant 0 : index
    %5 = vector.load %arg5[%c0_5, %c0_6] : memref<64x1xf32, #tpu.memory_space<vmem>>, vector<64x1xf32>
    %c0_7 = arith.constant 0 : index
    %c0_8 = arith.constant 0 : index
    %6 = vector.load %arg6[%c0_7, %c0_8] : memref<64x64xf32, #tpu.memory_space<vmem>>, vector<64x64xf32>
    %c0_9 = arith.constant 0 : index
    %c0_10 = arith.constant 0 : index
    %7 = vector.load %arg7[%c0_9, %c0_10] : memref<64x1xf32, #tpu.memory_space<vmem>>, vector<64x1xf32>
    %c0_11 = arith.constant 0 : index
    %c0_12 = arith.constant 0 : index
    %8 = vector.load %arg8[%c0_11, %c0_12] : memref<1x64xf32, #tpu.memory_space<vmem>>, vector<1x64xf32>
    %c0_13 = arith.constant 0 : index
    %c0_14 = arith.constant 0 : index
    %9 = vector.load %arg9[%c0_13, %c0_14] : memref<1x1xf32, #tpu.memory_space<vmem>>, vector<1x1xf32>
    %10 = vector.shape_cast %9 : vector<1x1xf32> to vector<1x1xf32>
    %11 = vector.broadcast %10 : vector<1x1xf32> to vector<1x256xf32>
    %c0_i32 = arith.constant 0 : i32
    %c256_i32 = arith.constant 256 : i32
    %12 = arith.muli %c0_i32, %c256_i32 : i32
    %13 = tpu.assume_multiple %12, 256 : i32
    %c0_15 = arith.constant 0 : index
    %14 = arith.index_cast %13 : i32 to index
    %15 = vector.load %arg1[%c0_15, %14] : memref<2x1024xf32, #tpu.memory_space<vmem>>, vector<2x256xf32>
    %16 = vector.extract_strided_slice %15 {offsets = [0, 0], sizes = [1, 256], strides = [1, 1]} : vector<2x256xf32> to vector<1x256xf32>
    %17 = vector.extract_strided_slice %15 {offsets = [1, 0], sizes = [1, 256], strides = [1, 1]} : vector<2x256xf32> to vector<1x256xf32>
    %18 = vector.broadcast %1 : vector<64x1xf32> to vector<64x256xf32>
    %19 = vector.broadcast %16 : vector<1x256xf32> to vector<64x256xf32>
    %20 = arith.mulf %18, %19 : vector<64x256xf32>
    %21 = vector.broadcast %2 : vector<64x1xf32> to vector<64x256xf32>
    %22 = vector.broadcast %17 : vector<1x256xf32> to vector<64x256xf32>
    %23 = arith.mulf %21, %22 : vector<64x256xf32>
    %24 = arith.addf %20, %23 : vector<64x256xf32>
    %25 = vector.broadcast %3 : vector<64x1xf32> to vector<64x256xf32>
    %26 = arith.addf %24, %25 : vector<64x256xf32>
    %27 = math.tanh %26 : vector<64x256xf32>
    %cst = arith.constant dense<0.000000e+00> : vector<64x256xf32>
    %28 = tpu.matmul %4, %27, %cst {dimension_numbers = #tpu.dot_dimension_numbers<[1], [0], [0], [1], [0, 0, 1, 1], [], []>} : vector<64x64xf32>, vector<64x256xf32>, vector<64x256xf32> -> vector<64x256xf32>
    %29 = vector.broadcast %5 : vector<64x1xf32> to vector<64x256xf32>
    %30 = arith.addf %28, %29 : vector<64x256xf32>
    %31 = math.tanh %30 : vector<64x256xf32>
    %32 = arith.addf %31, %27 : vector<64x256xf32>
    %cst_16 = arith.constant dense<0.000000e+00> : vector<64x256xf32>
    %33 = tpu.matmul %6, %32, %cst_16 {dimension_numbers = #tpu.dot_dimension_numbers<[1], [0], [0], [1], [0, 0, 1, 1], [], []>} : vector<64x64xf32>, vector<64x256xf32>, vector<64x256xf32> -> vector<64x256xf32>
    %34 = vector.broadcast %7 : vector<64x1xf32> to vector<64x256xf32>
    %35 = arith.addf %33, %34 : vector<64x256xf32>
    %36 = math.tanh %35 : vector<64x256xf32>
    %37 = arith.addf %36, %32 : vector<64x256xf32>
    %cst_17 = arith.constant dense<0.000000e+00> : vector<1x256xf32>
    %38 = tpu.matmul %8, %37, %cst_17 {dimension_numbers = #tpu.dot_dimension_numbers<[1], [0], [0], [1], [0, 0, 1, 1], [], []>} : vector<1x64xf32>, vector<64x256xf32>, vector<1x256xf32> -> vector<1x256xf32>
    %39 = arith.addf %38, %11 : vector<1x256xf32>
    %c0_18 = arith.constant 0 : index
    %40 = arith.index_cast %13 : i32 to index
    %41 = vector.load %arg10[%c0_18, %40] : memref<1x1024xf32, #tpu.memory_space<vmem>>, vector<1x256xf32>
    tpu.vector_store %arg10[%c0_18, %40], %39 {strides = array<i32>} : memref<1x1024xf32, #tpu.memory_space<vmem>>, vector<1x256xf32>,
    %c1_i32 = arith.constant 1 : i32
    %c256_i32_19 = arith.constant 256 : i32
    %42 = arith.muli %c1_i32, %c256_i32_19 : i32
    %43 = tpu.assume_multiple %42, 256 : i32
    %c0_20 = arith.constant 0 : index
    %44 = arith.index_cast %43 : i32 to index
    %45 = vector.load %arg1[%c0_20, %44] : memref<2x1024xf32, #tpu.memory_space<vmem>>, vector<2x256xf32>
    %46 = vector.extract_strided_slice %45 {offsets = [0, 0], sizes = [1, 256], strides = [1, 1]} : vector<2x256xf32> to vector<1x256xf32>
    %47 = vector.extract_strided_slice %45 {offsets = [1, 0], sizes = [1, 256], strides = [1, 1]} : vector<2x256xf32> to vector<1x256xf32>
    %48 = vector.broadcast %1 : vector<64x1xf32> to vector<64x256xf32>
    %49 = vector.broadcast %46 : vector<1x256xf32> to vector<64x256xf32>
    %50 = arith.mulf %48, %49 : vector<64x256xf32>
    %51 = vector.broadcast %2 : vector<64x1xf32> to vector<64x256xf32>
    %52 = vector.broadcast %47 : vector<1x256xf32> to vector<64x256xf32>
    %53 = arith.mulf %51, %52 : vector<64x256xf32>
    %54 = arith.addf %50, %53 : vector<64x256xf32>
    %55 = vector.broadcast %3 : vector<64x1xf32> to vector<64x256xf32>
    %56 = arith.addf %54, %55 : vector<64x256xf32>
    %57 = math.tanh %56 : vector<64x256xf32>
    %cst_21 = arith.constant dense<0.000000e+00> : vector<64x256xf32>
    %58 = tpu.matmul %4, %57, %cst_21 {dimension_numbers = #tpu.dot_dimension_numbers<[1], [0], [0], [1], [0, 0, 1, 1], [], []>} : vector<64x64xf32>, vector<64x256xf32>, vector<64x256xf32> -> vector<64x256xf32>
    %59 = vector.broadcast %5 : vector<64x1xf32> to vector<64x256xf32>
    %60 = arith.addf %58, %59 : vector<64x256xf32>
    %61 = math.tanh %60 : vector<64x256xf32>
    %62 = arith.addf %61, %57 : vector<64x256xf32>
    %cst_22 = arith.constant dense<0.000000e+00> : vector<64x256xf32>
    %63 = tpu.matmul %6, %62, %cst_22 {dimension_numbers = #tpu.dot_dimension_numbers<[1], [0], [0], [1], [0, 0, 1, 1], [], []>} : vector<64x64xf32>, vector<64x256xf32>, vector<64x256xf32> -> vector<64x256xf32>
    %64 = vector.broadcast %7 : vector<64x1xf32> to vector<64x256xf32>
    %65 = arith.addf %63, %64 : vector<64x256xf32>
    %66 = math.tanh %65 : vector<64x256xf32>
    %67 = arith.addf %66, %62 : vector<64x256xf32>
    %cst_23 = arith.constant dense<0.000000e+00> : vector<1x256xf32>
    %68 = tpu.matmul %8, %67, %cst_23 {dimension_numbers = #tpu.dot_dimension_numbers<[1], [0], [0], [1], [0, 0, 1, 1], [], []>} : vector<1x64xf32>, vector<64x256xf32>, vector<1x256xf32> -> vector<1x256xf32>
    %69 = arith.addf %68, %11 : vector<1x256xf32>
    %c0_24 = arith.constant 0 : index
    %70 = arith.index_cast %43 : i32 to index
    %71 = vector.load %arg10[%c0_24, %70] : memref<1x1024xf32, #tpu.memory_space<vmem>>, vector<1x256xf32>
    tpu.vector_store %arg10[%c0_24, %70], %69 {strides = array<i32>} : memref<1x1024xf32, #tpu.memory_space<vmem>>, vector<1x256xf32>,
    %c2_i32 = arith.constant 2 : i32
    %c256_i32_25 = arith.constant 256 : i32
    %72 = arith.muli %c2_i32, %c256_i32_25 : i32
    %73 = tpu.assume_multiple %72, 256 : i32
    %c0_26 = arith.constant 0 : index
    %74 = arith.index_cast %73 : i32 to index
    %75 = vector.load %arg1[%c0_26, %74] : memref<2x1024xf32, #tpu.memory_space<vmem>>, vector<2x256xf32>
    %76 = vector.extract_strided_slice %75 {offsets = [0, 0], sizes = [1, 256], strides = [1, 1]} : vector<2x256xf32> to vector<1x256xf32>
    %77 = vector.extract_strided_slice %75 {offsets = [1, 0], sizes = [1, 256], strides = [1, 1]} : vector<2x256xf32> to vector<1x256xf32>
    %78 = vector.broadcast %1 : vector<64x1xf32> to vector<64x256xf32>
    %79 = vector.broadcast %76 : vector<1x256xf32> to vector<64x256xf32>
    %80 = arith.mulf %78, %79 : vector<64x256xf32>
    %81 = vector.broadcast %2 : vector<64x1xf32> to vector<64x256xf32>
    %82 = vector.broadcast %77 : vector<1x256xf32> to vector<64x256xf32>
    %83 = arith.mulf %81, %82 : vector<64x256xf32>
    %84 = arith.addf %80, %83 : vector<64x256xf32>
    %85 = vector.broadcast %3 : vector<64x1xf32> to vector<64x256xf32>
    %86 = arith.addf %84, %85 : vector<64x256xf32>
    %87 = math.tanh %86 : vector<64x256xf32>
    %cst_27 = arith.constant dense<0.000000e+00> : vector<64x256xf32>
    %88 = tpu.matmul %4, %87, %cst_27 {dimension_numbers = #tpu.dot_dimension_numbers<[1], [0], [0], [1], [0, 0, 1, 1], [], []>} : vector<64x64xf32>, vector<64x256xf32>, vector<64x256xf32> -> vector<64x256xf32>
    %89 = vector.broadcast %5 : vector<64x1xf32> to vector<64x256xf32>
    %90 = arith.addf %88, %89 : vector<64x256xf32>
    %91 = math.tanh %90 : vector<64x256xf32>
    %92 = arith.addf %91, %87 : vector<64x256xf32>
    %cst_28 = arith.constant dense<0.000000e+00> : vector<64x256xf32>
    %93 = tpu.matmul %6, %92, %cst_28 {dimension_numbers = #tpu.dot_dimension_numbers<[1], [0], [0], [1], [0, 0, 1, 1], [], []>} : vector<64x64xf32>, vector<64x256xf32>, vector<64x256xf32> -> vector<64x256xf32>
    %94 = vector.broadcast %7 : vector<64x1xf32> to vector<64x256xf32>
    %95 = arith.addf %93, %94 : vector<64x256xf32>
    %96 = math.tanh %95 : vector<64x256xf32>
    %97 = arith.addf %96, %92 : vector<64x256xf32>
    %cst_29 = arith.constant dense<0.000000e+00> : vector<1x256xf32>
    %98 = tpu.matmul %8, %97, %cst_29 {dimension_numbers = #tpu.dot_dimension_numbers<[1], [0], [0], [1], [0, 0, 1, 1], [], []>} : vector<1x64xf32>, vector<64x256xf32>, vector<1x256xf32> -> vector<1x256xf32>
    %99 = arith.addf %98, %11 : vector<1x256xf32>
    %c0_30 = arith.constant 0 : index
    %100 = arith.index_cast %73 : i32 to index
    %101 = vector.load %arg10[%c0_30, %100] : memref<1x1024xf32, #tpu.memory_space<vmem>>, vector<1x256xf32>
    tpu.vector_store %arg10[%c0_30, %100], %99 {strides = array<i32>} : memref<1x1024xf32, #tpu.memory_space<vmem>>, vector<1x256xf32>,
    %c3_i32 = arith.constant 3 : i32
    %c256_i32_31 = arith.constant 256 : i32
    %102 = arith.muli %c3_i32, %c256_i32_31 : i32
    %103 = tpu.assume_multiple %102, 256 : i32
    %c0_32 = arith.constant 0 : index
    %104 = arith.index_cast %103 : i32 to index
    %105 = vector.load %arg1[%c0_32, %104] : memref<2x1024xf32, #tpu.memory_space<vmem>>, vector<2x256xf32>
    %106 = vector.extract_strided_slice %105 {offsets = [0, 0], sizes = [1, 256], strides = [1, 1]} : vector<2x256xf32> to vector<1x256xf32>
    %107 = vector.extract_strided_slice %105 {offsets = [1, 0], sizes = [1, 256], strides = [1, 1]} : vector<2x256xf32> to vector<1x256xf32>
    %108 = vector.broadcast %1 : vector<64x1xf32> to vector<64x256xf32>
    %109 = vector.broadcast %106 : vector<1x256xf32> to vector<64x256xf32>
    %110 = arith.mulf %108, %109 : vector<64x256xf32>
    %111 = vector.broadcast %2 : vector<64x1xf32> to vector<64x256xf32>
    %112 = vector.broadcast %107 : vector<1x256xf32> to vector<64x256xf32>
    %113 = arith.mulf %111, %112 : vector<64x256xf32>
    %114 = arith.addf %110, %113 : vector<64x256xf32>
    %115 = vector.broadcast %3 : vector<64x1xf32> to vector<64x256xf32>
    %116 = arith.addf %114, %115 : vector<64x256xf32>
    %117 = math.tanh %116 : vector<64x256xf32>
    %cst_33 = arith.constant dense<0.000000e+00> : vector<64x256xf32>
    %118 = tpu.matmul %4, %117, %cst_33 {dimension_numbers = #tpu.dot_dimension_numbers<[1], [0], [0], [1], [0, 0, 1, 1], [], []>} : vector<64x64xf32>, vector<64x256xf32>, vector<64x256xf32> -> vector<64x256xf32>
    %119 = vector.broadcast %5 : vector<64x1xf32> to vector<64x256xf32>
    %120 = arith.addf %118, %119 : vector<64x256xf32>
    %121 = math.tanh %120 : vector<64x256xf32>
    %122 = arith.addf %121, %117 : vector<64x256xf32>
    %cst_34 = arith.constant dense<0.000000e+00> : vector<64x256xf32>
    %123 = tpu.matmul %6, %122, %cst_34 {dimension_numbers = #tpu.dot_dimension_numbers<[1], [0], [0], [1], [0, 0, 1, 1], [], []>} : vector<64x64xf32>, vector<64x256xf32>, vector<64x256xf32> -> vector<64x256xf32>
    %124 = vector.broadcast %7 : vector<64x1xf32> to vector<64x256xf32>
    %125 = arith.addf %123, %124 : vector<64x256xf32>
    %126 = math.tanh %125 : vector<64x256xf32>
    %127 = arith.addf %126, %122 : vector<64x256xf32>
    %cst_35 = arith.constant dense<0.000000e+00> : vector<1x256xf32>
    %128 = tpu.matmul %8, %127, %cst_35 {dimension_numbers = #tpu.dot_dimension_numbers<[1], [0], [0], [1], [0, 0, 1, 1], [], []>} : vector<1x64xf32>, vector<64x256xf32>, vector<1x256xf32> -> vector<1x256xf32>
    %129 = arith.addf %128, %11 : vector<1x256xf32>
    %c0_36 = arith.constant 0 : index
    %130 = arith.index_cast %103 : i32 to index
    %131 = vector.load %arg10[%c0_36, %130] : memref<1x1024xf32, #tpu.memory_space<vmem>>, vector<1x256xf32>
    tpu.vector_store %arg10[%c0_36, %130], %129 {strides = array<i32>} : memref<1x1024xf32, #tpu.memory_space<vmem>>, vector<1x256xf32>,
    %c4_i32 = arith.constant 4 : i32
    return
  }
  func.func @transform_0(%arg0: i32) -> (i32, i32) {
    %c0_i32 = arith.constant 0 : i32
    %c0_i32_0 = arith.constant 0 : i32
    return %c0_i32, %arg0 : i32, i32
  }
  func.func @transform_1(%arg0: i32) -> (i32, i32) {
    %c0_i32 = arith.constant 0 : i32
    %c0_i32_0 = arith.constant 0 : i32
    %c0_i32_1 = arith.constant 0 : i32
    return %c0_i32, %c0_i32_0 : i32, i32
  }
  func.func @transform_2(%arg0: i32) -> (i32, i32) {
    %c0_i32 = arith.constant 0 : i32
    %c0_i32_0 = arith.constant 0 : i32
    %c0_i32_1 = arith.constant 0 : i32
    return %c0_i32, %c0_i32_0 : i32, i32
  }
  func.func @transform_3(%arg0: i32) -> (i32, i32) {
    %c0_i32 = arith.constant 0 : i32
    %c0_i32_0 = arith.constant 0 : i32
    %c0_i32_1 = arith.constant 0 : i32
    return %c0_i32, %c0_i32_0 : i32, i32
  }
  func.func @transform_4(%arg0: i32) -> (i32, i32) {
    %c0_i32 = arith.constant 0 : i32
    %c0_i32_0 = arith.constant 0 : i32
    %c0_i32_1 = arith.constant 0 : i32
    return %c0_i32, %c0_i32_0 : i32, i32
  }
  func.func @transform_5(%arg0: i32) -> (i32, i32) {
    %c0_i32 = arith.constant 0 : i32
    %c0_i32_0 = arith.constant 0 : i32
    %c0_i32_1 = arith.constant 0 : i32
    return %c0_i32, %c0_i32_0 : i32, i32
  }
  func.func @transform_6(%arg0: i32) -> (i32, i32) {
    %c0_i32 = arith.constant 0 : i32
    %c0_i32_0 = arith.constant 0 : i32
    %c0_i32_1 = arith.constant 0 : i32
    return %c0_i32, %c0_i32_0 : i32, i32
  }
  func.func @transform_7(%arg0: i32) -> (i32, i32) {
    %c0_i32 = arith.constant 0 : i32
    %c0_i32_0 = arith.constant 0 : i32
    %c0_i32_1 = arith.constant 0 : i32
    return %c0_i32, %c0_i32_0 : i32, i32
  }
  func.func @transform_8(%arg0: i32) -> (i32, i32) {
    %c0_i32 = arith.constant 0 : i32
    %c0_i32_0 = arith.constant 0 : i32
    %c0_i32_1 = arith.constant 0 : i32
    return %c0_i32, %c0_i32_0 : i32, i32
  }
  func.func @transform_9(%arg0: i32) -> (i32, i32) {
    %c0_i32 = arith.constant 0 : i32
    %c0_i32_0 = arith.constant 0 : i32
    return %c0_i32, %arg0 : i32, i32
  }
}

</mosaic_0001>

<llo_original>
// kernel: pinn_forward.1
$region0: #{pinn_forward.1}
  #allocation0 [shape = 'u32[]', space=smem, size = 0x4, offset = 0x4, fixed_abs, tag = 'smem constant byte address 0x4 - core index']
  #allocation1 [shape = 'u32[144,128]{1,0:T(1,128)}', space=vmem, size = 0x12000, scoped, tag = 'internal scratch']
  #allocation2 [shape = 'f32[1,1]{1,0:T(1,128)S(1)}', space=vmem, size = 0x200, scoped, tag = 'scoped memory for pinn_forward.1']
  %s0 = inlined_call_operand.vmem [shape: f32[2,2048], index: 0, kind: input, shape index: {}]
  %s1 = inlined_call_operand.vmem [shape: f32[64,2], index: 1, kind: input, shape index: {}]
  %s2 = inlined_call_operand.vmem [shape: f32[64,1], index: 2, kind: input, shape index: {}]
  %s3 = inlined_call_operand.vmem [shape: f32[64,64], index: 3, kind: input, shape index: {}]
  %s4 = inlined_call_operand.vmem [shape: f32[64,1], index: 4, kind: input, shape index: {}]
  %s5 = inlined_call_operand.vmem [shape: f32[64,64], index: 5, kind: input, shape index: {}]
  %s6 = inlined_call_operand.vmem [shape: f32[64,1], index: 6, kind: input, shape index: {}]
  %s7 = inlined_call_operand.vmem [shape: f32[1,64], index: 7, kind: input, shape index: {}]
  %s8 = inlined_call_operand.<no memory space> [shape: f32[1,1], index: 8, kind: input, shape index: {}]
  %s9 = inlined_call_operand.vmem [shape: f32[1,2048], index: 9, kind: output, shape index: {}]
  %s10 = sld [smem:[#allocation0]]
  $region69: #{pinn_forward.1} parent=0
    _
  %s12 = ssub.s32 1, %s10
  %s13 = scalar_select 0, %s12, %s10
  %v14 = vstv %s8
  %15 = vst [vmem:[#allocation2] sm:$0x1] %v14
  loop: start=0, step=1, limit=4
  $region2: #{pinn_forward.1} parent=0 // loop_pre_header
    _
  $region3: #{pinn_forward.1} parent=0 // loop_header
    %s17 = sphi 0, %s21
    %p18 = scmp.ge.s32.totalorder %s17, 4
    %s27 = sphi 0, %s29
    %s30 = sphi 0, %s27
    %s31 = sphi 0, %s30
    %s47 = sphi 0, %s31
    %s51 = sphi 0, %s51
    %s53 = sphi 0, %s51
    %s54 = sphi 0, %s53
    %s68 = sphi 0, %s54
    %s72 = sphi 0, %s72
    %s74 = sphi 0, %s72
    %s75 = sphi 0, %s74
    %s89 = sphi 0, %s75
    %s93 = sphi 0, %s93
    %s95 = sphi 0, %s93
    %s96 = sphi 0, %s95
    %s110 = sphi 0, %s96
    %s114 = sphi 0, %s114
    %s116 = sphi 0, %s114
    %s117 = sphi 0, %s116
    %s131 = sphi 0, %s117
    %s135 = sphi 0, %s135
    %s137 = sphi 0, %s135
    %s138 = sphi 0, %s137
    %s152 = sphi 0, %s138
    %s156 = sphi 0, %s156
    %s158 = sphi 0, %s156
    %s159 = sphi 0, %s158
    %s173 = sphi 0, %s159
    %s177 = sphi 0, %s177
    %s179 = sphi 0, %s177
    %s180 = sphi 0, %s179
    %s194 = sphi 0, %s180
    %s198 = sphi 0, %s198
    %s200 = sphi 0, %s198
    %s201 = sphi 0, %s200
    %s215 = sphi 0, %s201
    %s221 = sphi 0, %s223
    %s224 = sphi 0, %s221
    %s225 = sphi 0, %s224
    %s241 = sphi 0, %s225
  $region4: #{pinn_forward.1} parent=0 // loop_header_branch
    %20 = sbr.rel (%p18) target = $region8
  $region5: #{pinn_forward.1} parent=0 // loop_body
    %s22 = ssub.s32 %s17, 1
    %s23 = ssub.s32 %s17, 2
    %s24 = sadd.s32 %s17, 1
    %s25 = ssub.s32 %s17, %s24
    %p26 = scmp.eq.s32.totalorder %s25, 0
    %s28 = sadd.s32 %s27, 1
    %s29 = scalar_select %p26, %s27, %s28
    %p32 = pneg %p26
    %p33 = scmp.eq.s32.totalorder %s17, 1
    %p34 = por %p32, %p33
    %p35 = scmp.ne.s32.totalorder %s27, %s30
    %p36 = scmp.eq.s32.totalorder %s17, 0
    %p37 = por %p35, %p36
    %p38 = scmp.ne.s32.totalorder %s27, %s30
    %p39 = scmp.eq.s32.totalorder %s22, 1
    %p40 = por %p38, %p39
    %p41 = scmp.ne.s32.totalorder %s30, %s31
    %p42 = scmp.eq.s32.totalorder %s22, 0
    %p43 = por %p41, %p42
    %p44 = scmp.ne.s32.totalorder %s30, %s31
    %p45 = scmp.eq.s32.totalorder %s23, 1
    %p46 = por %p44, %p45
    %p48 = scmp.ne.s32.totalorder %s31, %s47
    %p49 = scmp.eq.s32.totalorder %s23, 0
    %p50 = por %p48, %p49
    %s52 = sadd.s32 %s51, 1
    %p55 = scmp.eq.s32.totalorder %s17, 1
    %p56 = scmp.ne.s32.totalorder %s51, %s53
    %p57 = scmp.eq.s32.totalorder %s17, 0
    %p58 = por %p56, %p57
    %p59 = scmp.ne.s32.totalorder %s51, %s53
    %p60 = scmp.eq.s32.totalorder %s22, 1
    %p61 = por %p59, %p60
    %p62 = scmp.ne.s32.totalorder %s53, %s54
    %p63 = scmp.eq.s32.totalorder %s22, 0
    %p64 = por %p62, %p63
    %p65 = scmp.ne.s32.totalorder %s53, %s54
    %p66 = scmp.eq.s32.totalorder %s23, 1
    %p67 = por %p65, %p66
    %p69 = scmp.ne.s32.totalorder %s54, %s68
    %p70 = scmp.eq.s32.totalorder %s23, 0
    %p71 = por %p69, %p70
    %s73 = sadd.s32 %s72, 1
    %p76 = scmp.eq.s32.totalorder %s17, 1
    %p77 = scmp.ne.s32.totalorder %s72, %s74
    %p78 = scmp.eq.s32.totalorder %s17, 0
    %p79 = por %p77, %p78
    %p80 = scmp.ne.s32.totalorder %s72, %s74
    %p81 = scmp.eq.s32.totalorder %s22, 1
    %p82 = por %p80, %p81
    %p83 = scmp.ne.s32.totalorder %s74, %s75
    %p84 = scmp.eq.s32.totalorder %s22, 0
    %p85 = por %p83, %p84
    %p86 = scmp.ne.s32.totalorder %s74, %s75
    %p87 = scmp.eq.s32.totalorder %s23, 1
    %p88 = por %p86, %p87
    %p90 = scmp.ne.s32.totalorder %s75, %s89
    %p91 = scmp.eq.s32.totalorder %s23, 0
    %p92 = por %p90, %p91
    %s94 = sadd.s32 %s93, 1
    %p97 = scmp.eq.s32.totalorder %s17, 1
    %p98 = scmp.ne.s32.totalorder %s93, %s95
    %p99 = scmp.eq.s32.totalorder %s17, 0
    %p100 = por %p98, %p99
    %p101 = scmp.ne.s32.totalorder %s93, %s95
    %p102 = scmp.eq.s32.totalorder %s22, 1
    %p103 = por %p101, %p102
    %p104 = scmp.ne.s32.totalorder %s95, %s96
    %p105 = scmp.eq.s32.totalorder %s22, 0
    %p106 = por %p104, %p105
    %p107 = scmp.ne.s32.totalorder %s95, %s96
    %p108 = scmp.eq.s32.totalorder %s23, 1
    %p109 = por %p107, %p108
    %p111 = scmp.ne.s32.totalorder %s96, %s110
    %p112 = scmp.eq.s32.totalorder %s23, 0
    %p113 = por %p111, %p112
    %s115 = sadd.s32 %s114, 1
    %p118 = scmp.eq.s32.totalorder %s17, 1
    %p119 = scmp.ne.s32.totalorder %s114, %s116
    %p120 = scmp.eq.s32.totalorder %s17, 0
    %p121 = por %p119, %p120
    %p122 = scmp.ne.s32.totalorder %s114, %s116
    %p123 = scmp.eq.s32.totalorder %s22, 1
    %p124 = por %p122, %p123
    %p125 = scmp.ne.s32.totalorder %s116, %s117
    %p126 = scmp.eq.s32.totalorder %s22, 0
    %p127 = por %p125, %p126
    %p128 = scmp.ne.s32.totalorder %s116, %s117
    %p129 = scmp.eq.s32.totalorder %s23, 1
    %p130 = por %p128, %p129
    %p132 = scmp.ne.s32.totalorder %s117, %s131
    %p133 = scmp.eq.s32.totalorder %s23, 0
    %p134 = por %p132, %p133
    %s136 = sadd.s32 %s135, 1
    %p139 = scmp.eq.s32.totalorder %s17, 1
    %p140 = scmp.ne.s32.totalorder %s135, %s137
    %p141 = scmp.eq.s32.totalorder %s17, 0
    %p142 = por %p140, %p141
    %p143 = scmp.ne.s32.totalorder %s135, %s137
    %p144 = scmp.eq.s32.totalorder %s22, 1
    %p145 = por %p143, %p144
    %p146 = scmp.ne.s32.totalorder %s137, %s138
    %p147 = scmp.eq.s32.totalorder %s22, 0
    %p148 = por %p146, %p147
    %p149 = scmp.ne.s32.totalorder %s137, %s138
    %p150 = scmp.eq.s32.totalorder %s23, 1
    %p151 = por %p149, %p150
    %p153 = scmp.ne.s32.totalorder %s138, %s152
    %p154 = scmp.eq.s32.totalorder %s23, 0
    %p155 = por %p153, %p154
    %s157 = sadd.s32 %s156, 1
    %p160 = scmp.eq.s32.totalorder %s17, 1
    %p161 = scmp.ne.s32.totalorder %s156, %s158
    %p162 = scmp.eq.s32.totalorder %s17, 0
    %p163 = por %p161, %p162
    %p164 = scmp.ne.s32.totalorder %s156, %s158
    %p165 = scmp.eq.s32.totalorder %s22, 1
    %p166 = por %p164, %p165
    %p167 = scmp.ne.s32.totalorder %s158, %s159
    %p168 = scmp.eq.s32.totalorder %s22, 0
    %p169 = por %p167, %p168
    %p170 = scmp.ne.s32.totalorder %s158, %s159
    %p171 = scmp.eq.s32.totalorder %s23, 1
    %p172 = por %p170, %p171
    %p174 = scmp.ne.s32.totalorder %s159, %s173
    %p175 = scmp.eq.s32.totalorder %s23, 0
    %p176 = por %p174, %p175
    %s178 = sadd.s32 %s177, 1
    %p181 = scmp.eq.s32.totalorder %s17, 1
    %p182 = scmp.ne.s32.totalorder %s177, %s179
    %p183 = scmp.eq.s32.totalorder %s17, 0
    %p184 = por %p182, %p183
    %p185 = scmp.ne.s32.totalorder %s177, %s179
    %p186 = scmp.eq.s32.totalorder %s22, 1
    %p187 = por %p185, %p186
    %p188 = scmp.ne.s32.totalorder %s179, %s180
    %p189 = scmp.eq.s32.totalorder %s22, 0
    %p190 = por %p188, %p189
    %p191 = scmp.ne.s32.totalorder %s179, %s180
    %p192 = scmp.eq.s32.totalorder %s23, 1
    %p193 = por %p191, %p192
    %p195 = scmp.ne.s32.totalorder %s180, %s194
    %p196 = scmp.eq.s32.totalorder %s23, 0
    %p197 = por %p195, %p196
    %s199 = sadd.s32 %s198, 1
    %p202 = scmp.eq.s32.totalorder %s17, 1
    %p203 = scmp.ne.s32.totalorder %s198, %s200
    %p204 = scmp.eq.s32.totalorder %s17, 0
    %p205 = por %p203, %p204
    %p206 = scmp.ne.s32.totalorder %s198, %s200
    %p207 = scmp.eq.s32.totalorder %s22, 1
    %p208 = por %p206, %p207
    %p209 = scmp.ne.s32.totalorder %s200, %s201
    %p210 = scmp.eq.s32.totalorder %s22, 0
    %p211 = por %p209, %p210
    %p212 = scmp.ne.s32.totalorder %s200, %s201
    %p213 = scmp.eq.s32.totalorder %s23, 1
    %p214 = por %p212, %p213
    %p216 = scmp.ne.s32.totalorder %s201, %s215
    %p217 = scmp.eq.s32.totalorder %s23, 0
    %p218 = por %p216, %p217
    %s219 = ssub.s32 %s17, %s24
    %p220 = scmp.eq.s32.totalorder %s219, 0
    %s222 = sadd.s32 %s221, 1
    %s223 = scalar_select %p220, %s221, %s222
    %p226 = pneg %p220
    %p227 = scmp.eq.s32.totalorder %s17, 1
    %p228 = por %p226, %p227
    %p229 = scmp.ne.s32.totalorder %s221, %s224
    %p230 = scmp.eq.s32.totalorder %s17, 0
    %p231 = por %p229, %p230
    %p232 = scmp.ne.s32.totalorder %s221, %s224
    %p233 = scmp.eq.s32.totalorder %s22, 1
    %p234 = por %p232, %p233
    %p235 = scmp.ne.s32.totalorder %s224, %s225
    %p236 = scmp.eq.s32.totalorder %s22, 0
    %p237 = por %p235, %p236
    %p238 = scmp.ne.s32.totalorder %s224, %s225
    %p239 = scmp.eq.s32.totalorder %s23, 1
    %p240 = por %p238, %p239
    %p242 = scmp.ne.s32.totalorder %s225, %s241
    %p243 = scmp.eq.s32.totalorder %s23, 0
    %p244 = por %p242, %p243
    %p245 = scmp.le.s32.totalorder 1, %s17
    %p246 = scmp.lt.s32.totalorder %s17, 3
    %p247 = pnand %p245, %p246
    %p248 = pneg %p247
    // Predicated region
    $region9: #{pinn_forward.1} parent=5 // pred_check
      _
    $region10: #{pinn_forward.1} parent=5 // pred_check_branch
      %250 = sbr.rel (%p247) target = $region12
    $region11: #{pinn_forward.1} parent=5 // pred_region
      %s251 = ssub.s32 %s17, 1
      // Predicated region
      $region13: #{pinn_forward.1} parent=11 // pred_check
        %p252 = pneg %p64
      $region14: #{pinn_forward.1} parent=11 // pred_check_branch
        %254 = sbr.rel (%p252) target = $region16
      $region15: #{pinn_forward.1} parent=11 // pred_region
        _
      $region16: #{pinn_forward.1} parent=11 // pred_fallthru
        _
      // Predicated region
      $region17: #{pinn_forward.1} parent=11 // pred_check
        %p255 = pneg %p85
      $region18: #{pinn_forward.1} parent=11 // pred_check_branch
        %257 = sbr.rel (%p255) target = $region20
      $region19: #{pinn_forward.1} parent=11 // pred_region
        _
      $region20: #{pinn_forward.1} parent=11 // pred_fallthru
        _
      // Predicated region
      $region21: #{pinn_forward.1} parent=11 // pred_check
        %p258 = pneg %p106
      $region22: #{pinn_forward.1} parent=11 // pred_check_branch
        %260 = sbr.rel (%p258) target = $region24
      $region23: #{pinn_forward.1} parent=11 // pred_region
        _
      $region24: #{pinn_forward.1} parent=11 // pred_fallthru
        _
      // Predicated region
      $region25: #{pinn_forward.1} parent=11 // pred_check
        %p261 = pneg %p127
      $region26: #{pinn_forward.1} parent=11 // pred_check_branch
        %263 = sbr.rel (%p261) target = $region28
      $region27: #{pinn_forward.1} parent=11 // pred_region
        _
      $region28: #{pinn_forward.1} parent=11 // pred_fallthru
        _
      // Predicated region
      $region29: #{pinn_forward.1} parent=11 // pred_check
        %p264 = pneg %p148
      $region30: #{pinn_forward.1} parent=11 // pred_check_branch
        %266 = sbr.rel (%p264) target = $region32
      $region31: #{pinn_forward.1} parent=11 // pred_region
        _
      $region32: #{pinn_forward.1} parent=11 // pred_fallthru
        _
      // Predicated region
      $region33: #{pinn_forward.1} parent=11 // pred_check
        %p267 = pneg %p169
      $region34: #{pinn_forward.1} parent=11 // pred_check_branch
        %269 = sbr.rel (%p267) target = $region36
      $region35: #{pinn_forward.1} parent=11 // pred_region
        _
      $region36: #{pinn_forward.1} parent=11 // pred_fallthru
        _
      // Predicated region
      $region37: #{pinn_forward.1} parent=11 // pred_check
        %p270 = pneg %p190
      $region38: #{pinn_forward.1} parent=11 // pred_check_branch
        %272 = sbr.rel (%p270) target = $region40
      $region39: #{pinn_forward.1} parent=11 // pred_region
        _
      $region40: #{pinn_forward.1} parent=11 // pred_fallthru
        _
      // Predicated region
      $region41: #{pinn_forward.1} parent=11 // pred_check
        %p273 = pneg %p211
      $region42: #{pinn_forward.1} parent=11 // pred_check_branch
        %275 = sbr.rel (%p273) target = $region44
      $region43: #{pinn_forward.1} parent=11 // pred_region
        _
      $region44: #{pinn_forward.1} parent=11 // pred_fallthru
        _
    $region12: #{pinn_forward.1} parent=5 // pred_fallthru
      _
    %p276 = scmp.lt.s32.totalorder %s17, 2
    // Predicated region
    $region45: #{pinn_forward.1} parent=5 // pred_check
      %p277 = pneg %p276
    $region46: #{pinn_forward.1} parent=5 // pred_check_branch
      %279 = sbr.rel (%p277) target = $region48
    $region47: #{pinn_forward.1} parent=5 // pred_region
      // Predicated region
      $region49: #{pinn_forward.1} parent=47 // pred_check
        %p280 = pneg %p37
      $region50: #{pinn_forward.1} parent=47 // pred_check_branch
        %282 = sbr.rel (%p280) target = $region52
      $region51: #{pinn_forward.1} parent=47 // pred_region
        %s283 = smul.u32 8, %s17
        %p284 = scmp.lt.s32.totalorder %s283, 15
        %s285 = scalar_select %p284, %s283, 15
        %s286 = smul.addr %s285, 2
        %s287 = scalar_lea.vmem %s0, %s286
        %s288 = smul.u32 8, %s17
      $region52: #{pinn_forward.1} parent=47 // pred_fallthru
        _
    $region48: #{pinn_forward.1} parent=5 // pred_fallthru
      _
    %p289 = scmp.le.s32.totalorder 1, %s17
    %p290 = scmp.lt.s32.totalorder %s17, 3
    %p291 = pnand %p289, %p290
    %p292 = pneg %p291
    // Predicated region
    $region53: #{pinn_forward.1} parent=5 // pred_check
      _
    $region54: #{pinn_forward.1} parent=5 // pred_check_branch
      %294 = sbr.rel (%p291) target = $region56
    $region55: #{pinn_forward.1} parent=5 // pred_region
      %s295 = ssub.s32 %s17, 1
      %s296 = smul.u32 8, %s22
      %p297 = scmp.lt.s32.totalorder %s296, 15
      %s298 = scalar_select %p297, %s296, 15
      %s299 = smul.addr %s298, 2
      %s300 = scalar_lea.vmem %s0, %s299
      %p301 = pneg %p43
      %p302 = pneg %p40
      %p303 = pneg %p64
      %p304 = pneg %p61
      %p305 = pneg %p85
      %p306 = pneg %p82
      %p307 = pneg %p106
      %p308 = pneg %p103
      %p309 = pneg %p127
      %p310 = pneg %p124
      %p311 = pneg %p148
      %p312 = pneg %p145
      %p313 = pneg %p169
      %p314 = pneg %p166
      %p315 = pneg %p190
      %p316 = pneg %p187
      %p317 = pneg %p211
      %p318 = pneg %p208
      %p319 = pneg %p237
      %p320 = pneg %p234
      %s321 = smul.u32 8, %s22
      %p322 = scmp.lt.s32.totalorder %s321, 15
      %s323 = scalar_select %p322, %s321, 15
      %s324 = scalar_lea.vmem %s9, %s323
      %s325 = smul.u32 8, %s22
      %p326 = scmp.lt.s32.totalorder %s325, 15
      %s327 = scalar_select %p326, %s325, 15
      %s328 = smul.addr %s327, 2
      %s329 = scalar_lea.vmem %s0, %s328
      %s330 = smul.u32 8, %s22
      %s331 = smul.u32 8, %s22
      %p332 = scmp.lt.s32.totalorder %s331, 15
      %s333 = scalar_select %p332, %s331, 15
      %s334 = scalar_lea.vmem %s9, %s333
      %s335 = smul.u32 8, %s22
      %v336 = vld [vmem:[%s1] sm:$0xff]
      %v337 = vld [vmem:[%s1 + $0x8] sm:$0xff]
      %v338 = vld [vmem:[%s1 + $0x10] sm:$0xff]
      %v339 = vld [vmem:[%s1 + $0x18] sm:$0xff]
      %v340 = vld [vmem:[%s1 + $0x20] sm:$0xff]
      %v341 = vld [vmem:[%s1 + $0x28] sm:$0xff]
      %v342 = vld [vmem:[%s1 + $0x30] sm:$0xff]
      %v343 = vld [vmem:[%s1 + $0x38] sm:$0xff]
      %v344 = vld [vmem:[%s2] sm:$0xff]
      %v345 = vld [vmem:[%s2 + $0x8] sm:$0xff]
      %v346 = vld [vmem:[%s2 + $0x10] sm:$0xff]
      %v347 = vld [vmem:[%s2 + $0x18] sm:$0xff]
      %v348 = vld [vmem:[%s2 + $0x20] sm:$0xff]
      %v349 = vld [vmem:[%s2 + $0x28] sm:$0xff]
      %v350 = vld [vmem:[%s2 + $0x30] sm:$0xff]
      %v351 = vld [vmem:[%s2 + $0x38] sm:$0xff]
      %v352 = vld [vmem:[%s3] sm:$0xff]
      %v353 = vld [vmem:[%s3 + $0x8] sm:$0xff]
      %v354 = vld [vmem:[%s3 + $0x10] sm:$0xff]
      %v355 = vld [vmem:[%s3 + $0x18] sm:$0xff]
      %v356 = vld [vmem:[%s3 + $0x20] sm:$0xff]
      %v357 = vld [vmem:[%s3 + $0x28] sm:$0xff]
      %v358 = vld [vmem:[%s3 + $0x30] sm:$0xff]
      %v359 = vld [vmem:[%s3 + $0x38] sm:$0xff]
      %v360 = vld [vmem:[%s4] sm:$0xff]
      %v361 = vld [vmem:[%s4 + $0x8] sm:$0xff]
      %v362 = vld [vmem:[%s4 + $0x10] sm:$0xff]
      %v363 = vld [vmem:[%s4 + $0x18] sm:$0xff]
      %v364 = vld [vmem:[%s4 + $0x20] sm:$0xff]
      %v365 = vld [vmem:[%s4 + $0x28] sm:$0xff]
      %v366 = vld [vmem:[%s4 + $0x30] sm:$0xff]
      %v367 = vld [vmem:[%s4 + $0x38] sm:$0xff]
      %v368 = vld [vmem:[%s5] sm:$0xff]
      %v369 = vld [vmem:[%s5 + $0x8] sm:$0xff]
      %v370 = vld [vmem:[%s5 + $0x10] sm:$0xff]
      %v371 = vld [vmem:[%s5 + $0x18] sm:$0xff]
      %v372 = vld [vmem:[%s5 + $0x20] sm:$0xff]
      %v373 = vld [vmem:[%s5 + $0x28] sm:$0xff]
      %v374 = vld [vmem:[%s5 + $0x30] sm:$0xff]
      %v375 = vld [vmem:[%s5 + $0x38] sm:$0xff]
      %v376 = vld [vmem:[%s6] sm:$0xff]
      %v377 = vld [vmem:[%s6 + $0x8] sm:$0xff]
      %v378 = vld [vmem:[%s6 + $0x10] sm:$0xff]
      %v379 = vld [vmem:[%s6 + $0x18] sm:$0xff]
      %v380 = vld [vmem:[%s6 + $0x20] sm:$0xff]
      %v381 = vld [vmem:[%s6 + $0x28] sm:$0xff]
      %v382 = vld [vmem:[%s6 + $0x30] sm:$0xff]
      %v383 = vld [vmem:[%s6 + $0x38] sm:$0xff]
      %v384 = vld [vmem:[%s7] sm:$0x1]
      %v385 = vld [vmem:[#allocation2] sm:$0x1]
      %387 = vset.pattern.permute.xlu0 0
      %388 = vperm.xlu0 %387, %v385
      %v389 = vpop.permute.xlu0 %388
      %v391 = vlaneseq
      %v392 = vshrl.u32 %v391, 7
      %v393 = vsub.s32 0, %v392
      %v394 = vrot.slane %v389, %v393
      %v395 = vld [vmem:[%s329] sm:$0xf]
      %397 = vset.pattern.permute.xlu0 0
      %398 = vperm.xlu0 %397, %v336
      %v399 = vpop.permute.xlu0 %398
      %402 = vset.pattern.permute.xlu0 0
      %403 = vperm.xlu0 %402, %v337
      %v404 = vpop.permute.xlu0 %403
      %407 = vset.pattern.permute.xlu0 0
      %408 = vperm.xlu0 %407, %v338
      %v409 = vpop.permute.xlu0 %408
      %412 = vset.pattern.permute.xlu0 0
      %413 = vperm.xlu0 %412, %v339
      %v414 = vpop.permute.xlu0 %413
      %417 = vset.pattern.permute.xlu0 0
      %418 = vperm.xlu0 %417, %v340
      %v419 = vpop.permute.xlu0 %418
      %422 = vset.pattern.permute.xlu0 0
      %423 = vperm.xlu0 %422, %v341
      %v424 = vpop.permute.xlu0 %423
      %427 = vset.pattern.permute.xlu0 0
      %428 = vperm.xlu0 %427, %v342
      %v429 = vpop.permute.xlu0 %428
      %432 = vset.pattern.permute.xlu0 0
      %433 = vperm.xlu0 %432, %v343
      %v434 = vpop.permute.xlu0 %433
      %v437 = vlaneseq
      %v438 = vshrl.u32 %v437, 7
      %v439 = vsub.s32 0, %v438
      %v440 = vrot.slane %v395, %v439
      %v441 = vlaneseq
      %v442 = vshrl.u32 %v441, 7
      %v443 = vsub.s32 2, %v442
      %v444 = vrot.slane %v395, %v443
      %v447 = vlaneseq
      %v448 = vshrl.u32 %v447, 7
      %v449 = vsub.s32 0, %v448
      %v450 = vrot.slane %v440, %v449
      %v451 = vlaneseq
      %v452 = vshrl.u32 %v451, 7
      %v453 = vsub.s32 0, %v452
      %v454 = vrot.slane %v444, %v453
      %v455 = vmul.f32 %v399, %v450
      %v456 = vmul.f32 %v399, %v454
      %v457 = vmul.f32 %v404, %v450
      %v458 = vmul.f32 %v404, %v454
      %v459 = vmul.f32 %v409, %v450
      %v460 = vmul.f32 %v409, %v454
      %v461 = vmul.f32 %v414, %v450
      %v462 = vmul.f32 %v414, %v454
      %v463 = vmul.f32 %v419, %v450
      %v464 = vmul.f32 %v419, %v454
      %v465 = vmul.f32 %v424, %v450
      %v466 = vmul.f32 %v424, %v454
      %v467 = vmul.f32 %v429, %v450
      %v468 = vmul.f32 %v429, %v454
      %v469 = vmul.f32 %v434, %v450
      %v470 = vmul.f32 %v434, %v454
      %471 = vset.pattern.permute.xlu0 1
      %472 = vperm.xlu0 %471, %v336
      %v473 = vpop.permute.xlu0 %472
      %475 = vset.pattern.permute.xlu0 1
      %476 = vperm.xlu0 %475, %v337
      %v477 = vpop.permute.xlu0 %476
      %479 = vset.pattern.permute.xlu0 1
      %480 = vperm.xlu0 %479, %v338
      %v481 = vpop.permute.xlu0 %480
      %483 = vset.pattern.permute.xlu0 1
      %484 = vperm.xlu0 %483, %v339
      %v485 = vpop.permute.xlu0 %484
      %487 = vset.pattern.permute.xlu0 1
      %488 = vperm.xlu0 %487, %v340
      %v489 = vpop.permute.xlu0 %488
      %491 = vset.pattern.permute.xlu0 1
      %492 = vperm.xlu0 %491, %v341
      %v493 = vpop.permute.xlu0 %492
      %495 = vset.pattern.permute.xlu0 1
      %496 = vperm.xlu0 %495, %v342
      %v497 = vpop.permute.xlu0 %496
      %499 = vset.pattern.permute.xlu0 1
      %500 = vperm.xlu0 %499, %v343
      %v501 = vpop.permute.xlu0 %500
      %v503 = vlaneseq
      %v504 = vshrl.u32 %v503, 7
      %v505 = vsub.s32 1, %v504
      %v506 = vrot.slane %v395, %v505
      %v507 = vlaneseq
      %v508 = vshrl.u32 %v507, 7
      %v509 = vsub.s32 3, %v508
      %v510 = vrot.slane %v395, %v509
      %v513 = vlaneseq
      %v514 = vshrl.u32 %v513, 7
      %v515 = vsub.s32 1, %v514
      %v516 = vrot.slane %v506, %v515
      %v517 = vlaneseq
      %v518 = vshrl.u32 %v517, 7
      %v519 = vsub.s32 1, %v518
      %v520 = vrot.slane %v510, %v519
      %v521 = vmul.f32 %v473, %v516
      %v522 = vmul.f32 %v473, %v520
      %v523 = vmul.f32 %v477, %v516
      %v524 = vmul.f32 %v477, %v520
      %v525 = vmul.f32 %v481, %v516
      %v526 = vmul.f32 %v481, %v520
      %v527 = vmul.f32 %v485, %v516
      %v528 = vmul.f32 %v485, %v520
      %v529 = vmul.f32 %v489, %v516
      %v530 = vmul.f32 %v489, %v520
      %v531 = vmul.f32 %v493, %v516
      %v532 = vmul.f32 %v493, %v520
      %v533 = vmul.f32 %v497, %v516
      %v534 = vmul.f32 %v497, %v520
      %v535 = vmul.f32 %v501, %v516
      %v536 = vmul.f32 %v501, %v520
      %v537 = vadd.f32 %v455, %v521
      %v538 = vadd.f32 %v456, %v522
      %v539 = vadd.f32 %v457, %v523
      %v540 = vadd.f32 %v458, %v524
      %v541 = vadd.f32 %v459, %v525
      %v542 = vadd.f32 %v460, %v526
      %v543 = vadd.f32 %v461, %v527
      %v544 = vadd.f32 %v462, %v528
      %v545 = vadd.f32 %v463, %v529
      %v546 = vadd.f32 %v464, %v530
      %v547 = vadd.f32 %v465, %v531
      %v548 = vadd.f32 %v466, %v532
      %v549 = vadd.f32 %v467, %v533
      %v550 = vadd.f32 %v468, %v534
      %v551 = vadd.f32 %v469, %v535
      %v552 = vadd.f32 %v470, %v536
      %554 = vset.pattern.permute.xlu0 0
      %555 = vperm.xlu0 %554, %v344
      %v556 = vpop.permute.xlu0 %555
      %559 = vset.pattern.permute.xlu0 0
      %560 = vperm.xlu0 %559, %v345
      %v561 = vpop.permute.xlu0 %560
      %564 = vset.pattern.permute.xlu0 0
      %565 = vperm.xlu0 %564, %v346
      %v566 = vpop.permute.xlu0 %565
      %569 = vset.pattern.permute.xlu0 0
      %570 = vperm.xlu0 %569, %v347
      %v571 = vpop.permute.xlu0 %570
      %574 = vset.pattern.permute.xlu0 0
      %575 = vperm.xlu0 %574, %v348
      %v576 = vpop.permute.xlu0 %575
      %579 = vset.pattern.permute.xlu0 0
      %580 = vperm.xlu0 %579, %v349
      %v581 = vpop.permute.xlu0 %580
      %584 = vset.pattern.permute.xlu0 0
      %585 = vperm.xlu0 %584, %v350
      %v586 = vpop.permute.xlu0 %585
      %589 = vset.pattern.permute.xlu0 0
      %590 = vperm.xlu0 %589, %v351
      %v591 = vpop.permute.xlu0 %590
      %v593 = vadd.f32 %v537, %v556
      %v594 = vadd.f32 %v538, %v556
      %v595 = vadd.f32 %v539, %v561
      %v596 = vadd.f32 %v540, %v561
      %v597 = vadd.f32 %v541, %v566
      %v598 = vadd.f32 %v542, %v566
      %v599 = vadd.f32 %v543, %v571
      %v600 = vadd.f32 %v544, %v571
      %v601 = vadd.f32 %v545, %v576
      %v602 = vadd.f32 %v546, %v576
      %v603 = vadd.f32 %v547, %v581
      %v604 = vadd.f32 %v548, %v581
      %v605 = vadd.f32 %v549, %v586
      %v606 = vadd.f32 %v550, %v586
      %v607 = vadd.f32 %v551, %v591
      %v608 = vadd.f32 %v552, %v591
      %v609 = vtanh.pop %v593
      %v610 = vtanh.pop %v594
      %v611 = vtanh.pop %v595
      %v612 = vtanh.pop %v596
      %v613 = vtanh.pop %v597
      %v614 = vtanh.pop %v598
      %v615 = vtanh.pop %v599
      %v616 = vtanh.pop %v600
      %v617 = vtanh.pop %v601
      %v618 = vtanh.pop %v602
      %v619 = vtanh.pop %v603
      %v620 = vtanh.pop %v604
      %v621 = vtanh.pop %v605
      %v622 = vtanh.pop %v606
      %v623 = vtanh.pop %v607
      %v624 = vtanh.pop %v608
      %626 = vset.pattern.permute.xlu0 0
      %627 = vperm.xlu0 %626, %v360
      %v628 = vpop.permute.xlu0 %627
      %631 = vset.pattern.permute.xlu0 0
      %632 = vperm.xlu0 %631, %v361
      %v633 = vpop.permute.xlu0 %632
      %636 = vset.pattern.permute.xlu0 0
      %637 = vperm.xlu0 %636, %v362
      %v638 = vpop.permute.xlu0 %637
      %641 = vset.pattern.permute.xlu0 0
      %642 = vperm.xlu0 %641, %v363
      %v643 = vpop.permute.xlu0 %642
      %646 = vset.pattern.permute.xlu0 0
      %647 = vperm.xlu0 %646, %v364
      %v648 = vpop.permute.xlu0 %647
      %651 = vset.pattern.permute.xlu0 0
      %652 = vperm.xlu0 %651, %v365
      %v653 = vpop.permute.xlu0 %652
      %656 = vset.pattern.permute.xlu0 0
      %657 = vperm.xlu0 %656, %v366
      %v658 = vpop.permute.xlu0 %657
      %661 = vset.pattern.permute.xlu0 0
      %662 = vperm.xlu0 %661, %v367
      %v663 = vpop.permute.xlu0 %662
      %vm665 = vcmask 523264
      %v667 = vsel %vm665, %v352, 0
      %v670 = vsel %vm665, %v353, 0
      %v673 = vsel %vm665, %v354, 0
      %v676 = vsel %vm665, %v355, 0
      %v679 = vsel %vm665, %v356, 0
      %v682 = vsel %vm665, %v357, 0
      %v685 = vsel %vm665, %v358, 0
      %v688 = vsel %vm665, %v359, 0
      %690 = vmatprep.subr.mxu0 %v610
      %691 = vmatpush1.msra.mxu0 %v609
      %692 = vmatprep.subr.mxu0 %v612
      %693 = vmatpush1.msra.mxu0 %v611
      %694 = vmatprep.subr.mxu0 %v614
      %695 = vmatpush1.msra.mxu0 %v613
      %696 = vmatprep.subr.mxu0 %v616
      %697 = vmatpush1.msra.mxu0 %v615
      %698 = vmatprep.subr.mxu0 %v618
      %699 = vmatpush1.msra.mxu0 %v617
      %700 = vmatprep.subr.mxu0 %v620
      %701 = vmatpush1.msra.mxu0 %v619
      %702 = vmatprep.subr.mxu0 %v622
      %703 = vmatpush1.msra.mxu0 %v621
      %704 = vmatprep.subr.mxu0 %v624
      %705 = vmatpush1.msra.mxu0 %v623
      %706 = vmatprep.subr.mxu0 0.0
      %707 = vmatpush1.msra.mxu0 0.0
      %708 = vmatprep.subr.mxu0 0.0
      %709 = vmatpush1.msra.mxu0 0.0
      %710 = vmatprep.subr.mxu0 0.0
      %711 = vmatpush1.msra.mxu0 0.0
      %712 = vmatprep.subr.mxu0 0.0
      %713 = vmatpush1.msra.mxu0 0.0
      %714 = vmatprep.subr.mxu0 0.0
      %715 = vmatpush1.msra.mxu0 0.0
      %716 = vmatprep.subr.mxu0 0.0
      %717 = vmatpush1.msra.mxu0 0.0
      %718 = vmatprep.subr.mxu0 0.0
      %719 = vmatpush1.msra.mxu0 0.0
      %720 = vmatprep.subr.mxu0 0.0
      %721 = vmatpush1.msra.mxu0 0.0
      %722 = vmatprep.subr.mxu0 0.0
      %723 = vmatpush1.msra.mxu0 0.0
      %724 = vmatprep.subr.mxu0 0.0
      %725 = vmatpush1.msra.mxu0 0.0
      %726 = vmatprep.subr.mxu0 0.0
      %727 = vmatpush1.msra.mxu0 0.0
      %728 = vmatprep.subr.mxu0 0.0
      %729 = vmatpush1.msra.mxu0 0.0
      %730 = vmatprep.subr.mxu0 0.0
      %731 = vmatpush1.msra.mxu0 0.0
      %732 = vmatprep.subr.mxu0 0.0
      %733 = vmatpush1.msra.mxu0 0.0
      %734 = vmatprep.subr.mxu0 0.0
      %735 = vmatpush1.msra.mxu0 0.0
      %736 = vmatprep.subr.mxu0 0.0
      %737 = vmatpush1.msra.mxu0 0.0
      %738 = vmatprep.subr.mxu0 0.0
      %739 = vmatpush1.msra.mxu0 0.0
      %740 = vmatprep.subr.mxu0 0.0
      %741 = vmatpush1.msra.mxu0 0.0
      %742 = vmatprep.subr.mxu0 0.0
      %743 = vmatpush1.msra.mxu0 0.0
      %744 = vmatprep.subr.mxu0 0.0
      %745 = vmatpush1.msra.mxu0 0.0
      %746 = vmatprep.subr.mxu0 0.0
      %747 = vmatpush1.msra.mxu0 0.0
      %748 = vmatprep.subr.mxu0 0.0
      %749 = vmatpush1.msra.mxu0 0.0
      %750 = vmatprep.subr.mxu0 0.0
      %751 = vmatpush1.msra.mxu0 0.0
      %752 = vmatprep.subr.mxu0 0.0
      %753 = vmatpush1.msra.mxu0 0.0
      %754 = vmatprep.mubr.f32.mxu0 0.0
      %755 = vmatmul.mubr.f32.gmra.mrb[0].mxu0 %v667
      %v756 = vpop.f32.mrb[0].mxu0
      %v757 = vadd.f32 %v628, %v756
      %v758 = vpop.f32.mrb[0].mxu0
      %v759 = vadd.f32 %v628, %v758
      %760 = vmatprep.mubr.f32.mxu0 0.0
      %761 = vmatmul.mubr.f32.gmra.mrb[0].mxu0 %v670
      %v762 = vpop.f32.mrb[0].mxu0
      %v763 = vadd.f32 %v633, %v762
      %v764 = vpop.f32.mrb[0].mxu0
      %v765 = vadd.f32 %v633, %v764
      %766 = vmatprep.mubr.f32.mxu0 0.0
      %767 = vmatmul.mubr.f32.gmra.mrb[0].mxu0 %v673
      %v768 = vpop.f32.mrb[0].mxu0
      %v769 = vadd.f32 %v638, %v768
      %v770 = vpop.f32.mrb[0].mxu0
      %v771 = vadd.f32 %v638, %v770
      %772 = vmatprep.mubr.f32.mxu0 0.0
      %773 = vmatmul.mubr.f32.gmra.mrb[0].mxu0 %v676
      %v774 = vpop.f32.mrb[0].mxu0
      %v775 = vadd.f32 %v643, %v774
      %v776 = vpop.f32.mrb[0].mxu0
      %v777 = vadd.f32 %v643, %v776
      %778 = vmatprep.mubr.f32.mxu0 0.0
      %779 = vmatmul.mubr.f32.gmra.mrb[0].mxu0 %v679
      %v780 = vpop.f32.mrb[0].mxu0
      %v781 = vadd.f32 %v648, %v780
      %v782 = vpop.f32.mrb[0].mxu0
      %v783 = vadd.f32 %v648, %v782
      %784 = vmatprep.mubr.f32.mxu0 0.0
      %785 = vmatmul.mubr.f32.gmra.mrb[0].mxu0 %v682
      %v786 = vpop.f32.mrb[0].mxu0
      %v787 = vadd.f32 %v653, %v786
      %v788 = vpop.f32.mrb[0].mxu0
      %v789 = vadd.f32 %v653, %v788
      %790 = vmatprep.mubr.f32.mxu0 0.0
      %791 = vmatmul.mubr.f32.gmra.mrb[0].mxu0 %v685
      %v792 = vpop.f32.mrb[0].mxu0
      %v793 = vadd.f32 %v658, %v792
      %v794 = vpop.f32.mrb[0].mxu0
      %v795 = vadd.f32 %v658, %v794
      %796 = vmatprep.mubr.f32.mxu0 0.0
      %797 = vmatmul.mubr.f32.gmra.mrb[0].mxu0 %v688
      %v798 = vpop.f32.mrb[0].mxu0
      %v799 = vadd.f32 %v663, %v798
      %v800 = vpop.f32.mrb[0].mxu0
      %v801 = vadd.f32 %v663, %v800
      %802 = vdwg.mxu0
      %v803 = vtanh.pop %v757
      %v804 = vtanh.pop %v759
      %v805 = vtanh.pop %v763
      %v806 = vtanh.pop %v765
      %v807 = vtanh.pop %v769
      %v808 = vtanh.pop %v771
      %v809 = vtanh.pop %v775
      %v810 = vtanh.pop %v777
      %v811 = vtanh.pop %v781
      %v812 = vtanh.pop %v783
      %v813 = vtanh.pop %v787
      %v814 = vtanh.pop %v789
      %v815 = vtanh.pop %v793
      %v816 = vtanh.pop %v795
      %v817 = vtanh.pop %v799
      %v818 = vtanh.pop %v801
      %v819 = vadd.f32 %v803, %v609
      %v820 = vadd.f32 %v804, %v610
      %v821 = vadd.f32 %v805, %v611
      %v822 = vadd.f32 %v806, %v612
      %v823 = vadd.f32 %v807, %v613
      %v824 = vadd.f32 %v808, %v614
      %v825 = vadd.f32 %v809, %v615
      %v826 = vadd.f32 %v810, %v616
      %v827 = vadd.f32 %v811, %v617
      %v828 = vadd.f32 %v812, %v618
      %v829 = vadd.f32 %v813, %v619
      %v830 = vadd.f32 %v814, %v620
      %v831 = vadd.f32 %v815, %v621
      %v832 = vadd.f32 %v816, %v622
      %v833 = vadd.f32 %v817, %v623
      %v834 = vadd.f32 %v818, %v624
      %836 = vset.pattern.permute.xlu0 0
      %837 = vperm.xlu0 %836, %v376
      %v838 = vpop.permute.xlu0 %837
      %841 = vset.pattern.permute.xlu0 0
      %842 = vperm.xlu0 %841, %v377
      %v843 = vpop.permute.xlu0 %842
      %846 = vset.pattern.permute.xlu0 0
      %847 = vperm.xlu0 %846, %v378
      %v848 = vpop.permute.xlu0 %847
      %851 = vset.pattern.permute.xlu0 0
      %852 = vperm.xlu0 %851, %v379
      %v853 = vpop.permute.xlu0 %852
      %856 = vset.pattern.permute.xlu0 0
      %857 = vperm.xlu0 %856, %v380
      %v858 = vpop.permute.xlu0 %857
      %861 = vset.pattern.permute.xlu0 0
      %862 = vperm.xlu0 %861, %v381
      %v863 = vpop.permute.xlu0 %862
      %866 = vset.pattern.permute.xlu0 0
      %867 = vperm.xlu0 %866, %v382
      %v868 = vpop.permute.xlu0 %867
      %871 = vset.pattern.permute.xlu0 0
      %872 = vperm.xlu0 %871, %v383
      %v873 = vpop.permute.xlu0 %872
      %v876 = vsel %vm665, %v368, 0
      %v879 = vsel %vm665, %v369, 0
      %v882 = vsel %vm665, %v370, 0
      %v885 = vsel %vm665, %v371, 0
      %v888 = vsel %vm665, %v372, 0
      %v891 = vsel %vm665, %v373, 0
      %v894 = vsel %vm665, %v374, 0
      %v897 = vsel %vm665, %v375, 0
      %899 = vmatprep.subr.mxu0 %v820
      %900 = vmatpush1.msra.mxu0 %v819
      %901 = vmatprep.subr.mxu0 %v822
      %902 = vmatpush1.msra.mxu0 %v821
      %903 = vmatprep.subr.mxu0 %v824
      %904 = vmatpush1.msra.mxu0 %v823
      %905 = vmatprep.subr.mxu0 %v826
      %906 = vmatpush1.msra.mxu0 %v825
      %907 = vmatprep.subr.mxu0 %v828
      %908 = vmatpush1.msra.mxu0 %v827
      %909 = vmatprep.subr.mxu0 %v830
      %910 = vmatpush1.msra.mxu0 %v829
      %911 = vmatprep.subr.mxu0 %v832
      %912 = vmatpush1.msra.mxu0 %v831
      %913 = vmatprep.subr.mxu0 %v834
      %914 = vmatpush1.msra.mxu0 %v833
      %915 = vmatprep.subr.mxu0 0.0
      %916 = vmatpush1.msra.mxu0 0.0
      %917 = vmatprep.subr.mxu0 0.0
      %918 = vmatpush1.msra.mxu0 0.0
      %919 = vmatprep.subr.mxu0 0.0
      %920 = vmatpush1.msra.mxu0 0.0
      %921 = vmatprep.subr.mxu0 0.0
      %922 = vmatpush1.msra.mxu0 0.0
      %923 = vmatprep.subr.mxu0 0.0
      %924 = vmatpush1.msra.mxu0 0.0
      %925 = vmatprep.subr.mxu0 0.0
      %926 = vmatpush1.msra.mxu0 0.0
      %927 = vmatprep.subr.mxu0 0.0
      %928 = vmatpush1.msra.mxu0 0.0
      %929 = vmatprep.subr.mxu0 0.0
      %930 = vmatpush1.msra.mxu0 0.0
      %931 = vmatprep.subr.mxu0 0.0
      %932 = vmatpush1.msra.mxu0 0.0
      %933 = vmatprep.subr.mxu0 0.0
      %934 = vmatpush1.msra.mxu0 0.0
      %935 = vmatprep.subr.mxu0 0.0
      %936 = vmatpush1.msra.mxu0 0.0
      %937 = vmatprep.subr.mxu0 0.0
      %938 = vmatpush1.msra.mxu0 0.0
      %939 = vmatprep.subr.mxu0 0.0
      %940 = vmatpush1.msra.mxu0 0.0
      %941 = vmatprep.subr.mxu0 0.0
      %942 = vmatpush1.msra.mxu0 0.0
      %943 = vmatprep.subr.mxu0 0.0
      %944 = vmatpush1.msra.mxu0 0.0
      %945 = vmatprep.subr.mxu0 0.0
      %946 = vmatpush1.msra.mxu0 0.0
      %947 = vmatprep.subr.mxu0 0.0
      %948 = vmatpush1.msra.mxu0 0.0
      %949 = vmatprep.subr.mxu0 0.0
      %950 = vmatpush1.msra.mxu0 0.0
      %951 = vmatprep.subr.mxu0 0.0
      %952 = vmatpush1.msra.mxu0 0.0
      %953 = vmatprep.subr.mxu0 0.0
      %954 = vmatpush1.msra.mxu0 0.0
      %955 = vmatprep.subr.mxu0 0.0
      %956 = vmatpush1.msra.mxu0 0.0
      %957 = vmatprep.subr.mxu0 0.0
      %958 = vmatpush1.msra.mxu0 0.0
      %959 = vmatprep.subr.mxu0 0.0
      %960 = vmatpush1.msra.mxu0 0.0
      %961 = vmatprep.subr.mxu0 0.0
      %962 = vmatpush1.msra.mxu0 0.0
      %963 = vmatprep.mubr.f32.mxu0 0.0
      %964 = vmatmul.mubr.f32.gmra.mrb[0].mxu0 %v876
      %v965 = vpop.f32.mrb[0].mxu0
      %v966 = vadd.f32 %v838, %v965
      %v967 = vpop.f32.mrb[0].mxu0
      %v968 = vadd.f32 %v838, %v967
      %969 = vmatprep.mubr.f32.mxu0 0.0
      %970 = vmatmul.mubr.f32.gmra.mrb[0].mxu0 %v879
      %v971 = vpop.f32.mrb[0].mxu0
      %v972 = vadd.f32 %v843, %v971
      %v973 = vpop.f32.mrb[0].mxu0
      %v974 = vadd.f32 %v843, %v973
      %975 = vmatprep.mubr.f32.mxu0 0.0
      %976 = vmatmul.mubr.f32.gmra.mrb[0].mxu0 %v882
      %v977 = vpop.f32.mrb[0].mxu0
      %v978 = vadd.f32 %v848, %v977
      %v979 = vpop.f32.mrb[0].mxu0
      %v980 = vadd.f32 %v848, %v979
      %981 = vmatprep.mubr.f32.mxu0 0.0
      %982 = vmatmul.mubr.f32.gmra.mrb[0].mxu0 %v885
      %v983 = vpop.f32.mrb[0].mxu0
      %v984 = vadd.f32 %v853, %v983
      %v985 = vpop.f32.mrb[0].mxu0
      %v986 = vadd.f32 %v853, %v985
      %987 = vmatprep.mubr.f32.mxu0 0.0
      %988 = vmatmul.mubr.f32.gmra.mrb[0].mxu0 %v888
      %v989 = vpop.f32.mrb[0].mxu0
      %v990 = vadd.f32 %v858, %v989
      %v991 = vpop.f32.mrb[0].mxu0
      %v992 = vadd.f32 %v858, %v991
      %993 = vmatprep.mubr.f32.mxu0 0.0
      %994 = vmatmul.mubr.f32.gmra.mrb[0].mxu0 %v891
      %v995 = vpop.f32.mrb[0].mxu0
      %v996 = vadd.f32 %v863, %v995
      %v997 = vpop.f32.mrb[0].mxu0
      %v998 = vadd.f32 %v863, %v997
      %999 = vmatprep.mubr.f32.mxu0 0.0
      %1000 = vmatmul.mubr.f32.gmra.mrb[0].mxu0 %v894
      %v1001 = vpop.f32.mrb[0].mxu0
      %v1002 = vadd.f32 %v868, %v1001
      %v1003 = vpop.f32.mrb[0].mxu0
      %v1004 = vadd.f32 %v868, %v1003
      %1005 = vmatprep.mubr.f32.mxu0 0.0
      %1006 = vmatmul.mubr.f32.gmra.mrb[0].mxu0 %v897
      %v1007 = vpop.f32.mrb[0].mxu0
      %v1008 = vadd.f32 %v873, %v1007
      %v1009 = vpop.f32.mrb[0].mxu0
      %v1010 = vadd.f32 %v873, %v1009
      %1011 = vdwg.mxu0
      %v1012 = vtanh.pop %v966
      %v1013 = vtanh.pop %v968
      %v1014 = vtanh.pop %v972
      %v1015 = vtanh.pop %v974
      %v1016 = vtanh.pop %v978
      %v1017 = vtanh.pop %v980
      %v1018 = vtanh.pop %v984
      %v1019 = vtanh.pop %v986
      %v1020 = vtanh.pop %v990
      %v1021 = vtanh.pop %v992
      %v1022 = vtanh.pop %v996
      %v1023 = vtanh.pop %v998
      %v1024 = vtanh.pop %v1002
      %v1025 = vtanh.pop %v1004
      %v1026 = vtanh.pop %v1008
      %v1027 = vtanh.pop %v1010
      %v1028 = vadd.f32 %v1012, %v819
      %v1029 = vadd.f32 %v1013, %v820
      %v1030 = vadd.f32 %v1014, %v821
      %v1031 = vadd.f32 %v1015, %v822
      %v1032 = vadd.f32 %v1016, %v823
      %v1033 = vadd.f32 %v1017, %v824
      %v1034 = vadd.f32 %v1018, %v825
      %v1035 = vadd.f32 %v1019, %v826
      %v1036 = vadd.f32 %v1020, %v827
      %v1037 = vadd.f32 %v1021, %v828
      %v1038 = vadd.f32 %v1022, %v829
      %v1039 = vadd.f32 %v1023, %v830
      %v1040 = vadd.f32 %v1024, %v831
      %v1041 = vadd.f32 %v1025, %v832
      %v1042 = vadd.f32 %v1026, %v833
      %v1043 = vadd.f32 %v1027, %v834
      %v1045 = vsel %vm665, %v384, 0
      %1047 = vmatprep.subr.mxu0 %v1029
      %1048 = vmatpush1.msra.mxu0 %v1028
      %1049 = vmatprep.subr.mxu0 %v1031
      %1050 = vmatpush1.msra.mxu0 %v1030
      %1051 = vmatprep.subr.mxu0 %v1033
      %1052 = vmatpush1.msra.mxu0 %v1032
      %1053 = vmatprep.subr.mxu0 %v1035
      %1054 = vmatpush1.msra.mxu0 %v1034
      %1055 = vmatprep.subr.mxu0 %v1037
      %1056 = vmatpush1.msra.mxu0 %v1036
      %1057 = vmatprep.subr.mxu0 %v1039
      %1058 = vmatpush1.msra.mxu0 %v1038
      %1059 = vmatprep.subr.mxu0 %v1041
      %1060 = vmatpush1.msra.mxu0 %v1040
      %1061 = vmatprep.subr.mxu0 %v1043
      %1062 = vmatpush1.msra.mxu0 %v1042
      %1063 = vmatprep.subr.mxu0 0.0
      %1064 = vmatpush1.msra.mxu0 0.0
      %1065 = vmatprep.subr.mxu0 0.0
      %1066 = vmatpush1.msra.mxu0 0.0
      %1067 = vmatprep.subr.mxu0 0.0
      %1068 = vmatpush1.msra.mxu0 0.0
      %1069 = vmatprep.subr.mxu0 0.0
      %1070 = vmatpush1.msra.mxu0 0.0
      %1071 = vmatprep.subr.mxu0 0.0
      %1072 = vmatpush1.msra.mxu0 0.0
      %1073 = vmatprep.subr.mxu0 0.0
      %1074 = vmatpush1.msra.mxu0 0.0
      %1075 = vmatprep.subr.mxu0 0.0
      %1076 = vmatpush1.msra.mxu0 0.0
      %1077 = vmatprep.subr.mxu0 0.0
      %1078 = vmatpush1.msra.mxu0 0.0
      %1079 = vmatprep.subr.mxu0 0.0
      %1080 = vmatpush1.msra.mxu0 0.0
      %1081 = vmatprep.subr.mxu0 0.0
      %1082 = vmatpush1.msra.mxu0 0.0
      %1083 = vmatprep.subr.mxu0 0.0
      %1084 = vmatpush1.msra.mxu0 0.0
      %1085 = vmatprep.subr.mxu0 0.0
      %1086 = vmatpush1.msra.mxu0 0.0
      %1087 = vmatprep.subr.mxu0 0.0
      %1088 = vmatpush1.msra.mxu0 0.0
      %1089 = vmatprep.subr.mxu0 0.0
      %1090 = vmatpush1.msra.mxu0 0.0
      %1091 = vmatprep.subr.mxu0 0.0
      %1092 = vmatpush1.msra.mxu0 0.0
      %1093 = vmatprep.subr.mxu0 0.0
      %1094 = vmatpush1.msra.mxu0 0.0
      %1095 = vmatprep.subr.mxu0 0.0
      %1096 = vmatpush1.msra.mxu0 0.0
      %1097 = vmatprep.subr.mxu0 0.0
      %1098 = vmatpush1.msra.mxu0 0.0
      %1099 = vmatprep.subr.mxu0 0.0
      %1100 = vmatpush1.msra.mxu0 0.0
      %1101 = vmatprep.subr.mxu0 0.0
      %1102 = vmatpush1.msra.mxu0 0.0
      %1103 = vmatprep.subr.mxu0 0.0
      %1104 = vmatpush1.msra.mxu0 0.0
      %1105 = vmatprep.subr.mxu0 0.0
      %1106 = vmatpush1.msra.mxu0 0.0
      %1107 = vmatprep.subr.mxu0 0.0
      %1108 = vmatpush1.msra.mxu0 0.0
      %1109 = vmatprep.subr.mxu0 0.0
      %1110 = vmatpush1.msra.mxu0 0.0
      %1111 = vmatprep.mubr.f32.mxu0 0.0
      %1112 = vmatmul.mubr.f32.gmra.mrb[0].mxu0 %v1045
      %v1113 = vpop.f32.mrb[0].mxu0
      %v1114 = vadd.f32 %v394, %v1113
      %v1115 = vpop.f32.mrb[0].mxu0
      %v1116 = vadd.f32 %v394, %v1115
      %1117 = vdwg.mxu0
      %v1120 = vcombine.low %v1114, %v1116
      %v1122 = vunpack.c.l.s4 1966171168
      %v1123 = vunpack.c.0.s8 %v1122
      %v1124 = vlaneseq
      %v1125 = vshrl.u32 %v1124, 7
      %v1126 = vsub.s32 %v1123, %v1125
      %v1127 = vrot.slane %v1120, %v1126
      %v1129 = vunpack.c.l.s4 1966171168
      %v1130 = vunpack.c.0.s8 %v1129
      %v1131 = vlaneseq
      %v1132 = vshrl.u32 %v1131, 7
      %v1133 = vsub.s32 %v1130, %v1132
      %v1134 = vrot.slane %v1127, %v1133
      %v1136 = vlaneseq
      %vm1137 = vcmp.ge.s32.totalorder %v1136, 0
      %vm1138 = vcmp.lt.s32.totalorder %v1136, 256
      %vm1139 = vmand %vm1137, %vm1138
      %1140 = vst.msk [vmem:[%s334] sm:$0x3] %vm1139, %v1134
      %s1141 = scalar_lea.vmem %s329, 4
      %v1142 = vld [vmem:[%s1141] sm:$0xf]
      %v1144 = vlaneseq
      %v1145 = vshrl.u32 %v1144, 7
      %v1146 = vsub.s32 0, %v1145
      %v1147 = vrot.slane %v1142, %v1146
      %v1148 = vlaneseq
      %v1149 = vshrl.u32 %v1148, 7
      %v1150 = vsub.s32 2, %v1149
      %v1151 = vrot.slane %v1142, %v1150
      %v1154 = vlaneseq
      %v1155 = vshrl.u32 %v1154, 7
      %v1156 = vsub.s32 0, %v1155
      %v1157 = vrot.slane %v1147, %v1156
      %v1158 = vlaneseq
      %v1159 = vshrl.u32 %v1158, 7
      %v1160 = vsub.s32 0, %v1159
      %v1161 = vrot.slane %v1151, %v1160
      %v1162 = vmul.f32 %v399, %v1157
      %v1163 = vmul.f32 %v399, %v1161
      %v1164 = vmul.f32 %v404, %v1157
      %v1165 = vmul.f32 %v404, %v1161
      %v1166 = vmul.f32 %v409, %v1157
      %v1167 = vmul.f32 %v409, %v1161
      %v1168 = vmul.f32 %v414, %v1157
      %v1169 = vmul.f32 %v414, %v1161
      %v1170 = vmul.f32 %v419, %v1157
      %v1171 = vmul.f32 %v419, %v1161
      %v1172 = vmul.f32 %v424, %v1157
      %v1173 = vmul.f32 %v424, %v1161
      %v1174 = vmul.f32 %v429, %v1157
      %v1175 = vmul.f32 %v429, %v1161
      %v1176 = vmul.f32 %v434, %v1157
      %v1177 = vmul.f32 %v434, %v1161
      %v1178 = vlaneseq
      %v1179 = vshrl.u32 %v1178, 7
      %v1180 = vsub.s32 1, %v1179
      %v1181 = vrot.slane %v1142, %v1180
      %v1182 = vlaneseq
      %v1183 = vshrl.u32 %v1182, 7
      %v1184 = vsub.s32 3, %v1183
      %v1185 = vrot.slane %v1142, %v1184
      %v1188 = vlaneseq
      %v1189 = vshrl.u32 %v1188, 7
      %v1190 = vsub.s32 1, %v1189
      %v1191 = vrot.slane %v1181, %v1190
      %v1192 = vlaneseq
      %v1193 = vshrl.u32 %v1192, 7
      %v1194 = vsub.s32 1, %v1193
      %v1195 = vrot.slane %v1185, %v1194
      %v1196 = vmul.f32 %v473, %v1191
      %v1197 = vmul.f32 %v473, %v1195
      %v1198 = vmul.f32 %v477, %v1191
      %v1199 = vmul.f32 %v477, %v1195
      %v1200 = vmul.f32 %v481, %v1191
      %v1201 = vmul.f32 %v481, %v1195
      %v1202 = vmul.f32 %v485, %v1191
      %v1203 = vmul.f32 %v485, %v1195
      %v1204 = vmul.f32 %v489, %v1191
      %v1205 = vmul.f32 %v489, %v1195
      %v1206 = vmul.f32 %v493, %v1191
      %v1207 = vmul.f32 %v493, %v1195
      %v1208 = vmul.f32 %v497, %v1191
      %v1209 = vmul.f32 %v497, %v1195
      %v1210 = vmul.f32 %v501, %v1191
      %v1211 = vmul.f32 %v501, %v1195
      %v1212 = vadd.f32 %v1162, %v1196
      %v1213 = vadd.f32 %v1163, %v1197
      %v1214 = vadd.f32 %v1164, %v1198
      %v1215 = vadd.f32 %v1165, %v1199
      %v1216 = vadd.f32 %v1166, %v1200
      %v1217 = vadd.f32 %v1167, %v1201
      %v1218 = vadd.f32 %v1168, %v1202
      %v1219 = vadd.f32 %v1169, %v1203
      %v1220 = vadd.f32 %v1170, %v1204
      %v1221 = vadd.f32 %v1171, %v1205
      %v1222 = vadd.f32 %v1172, %v1206
      %v1223 = vadd.f32 %v1173, %v1207
      %v1224 = vadd.f32 %v1174, %v1208
      %v1225 = vadd.f32 %v1175, %v1209
      %v1226 = vadd.f32 %v1176, %v1210
      %v1227 = vadd.f32 %v1177, %v1211
      %v1228 = vadd.f32 %v1212, %v556
      %v1229 = vadd.f32 %v1213, %v556
      %v1230 = vadd.f32 %v1214, %v561
      %v1231 = vadd.f32 %v1215, %v561
      %v1232 = vadd.f32 %v1216, %v566
      %v1233 = vadd.f32 %v1217, %v566
      %v1234 = vadd.f32 %v1218, %v571
      %v1235 = vadd.f32 %v1219, %v571
      %v1236 = vadd.f32 %v1220, %v576
      %v1237 = vadd.f32 %v1221, %v576
      %v1238 = vadd.f32 %v1222, %v581
      %v1239 = vadd.f32 %v1223, %v581
      %v1240 = vadd.f32 %v1224, %v586
      %v1241 = vadd.f32 %v1225, %v586
      %v1242 = vadd.f32 %v1226, %v591
      %v1243 = vadd.f32 %v1227, %v591
      %v1244 = vtanh.pop %v1228
      %v1245 = vtanh.pop %v1229
      %v1246 = vtanh.pop %v1230
      %v1247 = vtanh.pop %v1231
      %v1248 = vtanh.pop %v1232
      %v1249 = vtanh.pop %v1233
      %v1250 = vtanh.pop %v1234
      %v1251 = vtanh.pop %v1235
      %v1252 = vtanh.pop %v1236
      %v1253 = vtanh.pop %v1237
      %v1254 = vtanh.pop %v1238
      %v1255 = vtanh.pop %v1239
      %v1256 = vtanh.pop %v1240
      %v1257 = vtanh.pop %v1241
      %v1258 = vtanh.pop %v1242
      %v1259 = vtanh.pop %v1243
      %1260 = vmatprep.subr.mxu0 %v1245
      %1261 = vmatpush1.msra.mxu0 %v1244
      %1262 = vmatprep.subr.mxu0 %v1247
      %1263 = vmatpush1.msra.mxu0 %v1246
      %1264 = vmatprep.subr.mxu0 %v1249
      %1265 = vmatpush1.msra.mxu0 %v1248
      %1266 = vmatprep.subr.mxu0 %v1251
      %1267 = vmatpush1.msra.mxu0 %v1250
      %1268 = vmatprep.subr.mxu0 %v1253
      %1269 = vmatpush1.msra.mxu0 %v1252
      %1270 = vmatprep.subr.mxu0 %v1255
      %1271 = vmatpush1.msra.mxu0 %v1254
      %1272 = vmatprep.subr.mxu0 %v1257
      %1273 = vmatpush1.msra.mxu0 %v1256
      %1274 = vmatprep.subr.mxu0 %v1259
      %1275 = vmatpush1.msra.mxu0 %v1258
      %1276 = vmatprep.subr.mxu0 0.0
      %1277 = vmatpush1.msra.mxu0 0.0
      %1278 = vmatprep.subr.mxu0 0.0
      %1279 = vmatpush1.msra.mxu0 0.0
      %1280 = vmatprep.subr.mxu0 0.0
      %1281 = vmatpush1.msra.mxu0 0.0
      %1282 = vmatprep.subr.mxu0 0.0
      %1283 = vmatpush1.msra.mxu0 0.0
      %1284 = vmatprep.subr.mxu0 0.0
      %1285 = vmatpush1.msra.mxu0 0.0
      %1286 = vmatprep.subr.mxu0 0.0
      %1287 = vmatpush1.msra.mxu0 0.0
      %1288 = vmatprep.subr.mxu0 0.0
      %1289 = vmatpush1.msra.mxu0 0.0
      %1290 = vmatprep.subr.mxu0 0.0
      %1291 = vmatpush1.msra.mxu0 0.0
      %1292 = vmatprep.subr.mxu0 0.0
      %1293 = vmatpush1.msra.mxu0 0.0
      %1294 = vmatprep.subr.mxu0 0.0
      %1295 = vmatpush1.msra.mxu0 0.0
      %1296 = vmatprep.subr.mxu0 0.0
      %1297 = vmatpush1.msra.mxu0 0.0
      %1298 = vmatprep.subr.mxu0 0.0
      %1299 = vmatpush1.msra.mxu0 0.0
      %1300 = vmatprep.subr.mxu0 0.0
      %1301 = vmatpush1.msra.mxu0 0.0
      %1302 = vmatprep.subr.mxu0 0.0
      %1303 = vmatpush1.msra.mxu0 0.0
      %1304 = vmatprep.subr.mxu0 0.0
      %1305 = vmatpush1.msra.mxu0 0.0
      %1306 = vmatprep.subr.mxu0 0.0
      %1307 = vmatpush1.msra.mxu0 0.0
      %1308 = vmatprep.subr.mxu0 0.0
      %1309 = vmatpush1.msra.mxu0 0.0
      %1310 = vmatprep.subr.mxu0 0.0
      %1311 = vmatpush1.msra.mxu0 0.0
      %1312 = vmatprep.subr.mxu0 0.0
      %1313 = vmatpush1.msra.mxu0 0.0
      %1314 = vmatprep.subr.mxu0 0.0
      %1315 = vmatpush1.msra.mxu0 0.0
      %1316 = vmatprep.subr.mxu0 0.0
      %1317 = vmatpush1.msra.mxu0 0.0
      %1318 = vmatprep.subr.mxu0 0.0
      %1319 = vmatpush1.msra.mxu0 0.0
      %1320 = vmatprep.subr.mxu0 0.0
      %1321 = vmatpush1.msra.mxu0 0.0
      %1322 = vmatprep.subr.mxu0 0.0
      %1323 = vmatpush1.msra.mxu0 0.0
      %1324 = vmatprep.mubr.f32.mxu0 0.0
      %1325 = vmatmul.mubr.f32.gmra.mrb[0].mxu0 %v667
      %v1326 = vpop.f32.mrb[0].mxu0
      %v1327 = vadd.f32 %v628, %v1326
      %v1328 = vpop.f32.mrb[0].mxu0
      %v1329 = vadd.f32 %v628, %v1328
      %1330 = vmatprep.mubr.f32.mxu0 0.0
      %1331 = vmatmul.mubr.f32.gmra.mrb[0].mxu0 %v670
      %v1332 = vpop.f32.mrb[0].mxu0
      %v1333 = vadd.f32 %v633, %v1332
      %v1334 = vpop.f32.mrb[0].mxu0
      %v1335 = vadd.f32 %v633, %v1334
      %1336 = vmatprep.mubr.f32.mxu0 0.0
      %1337 = vmatmul.mubr.f32.gmra.mrb[0].mxu0 %v673
      %v1338 = vpop.f32.mrb[0].mxu0
      %v1339 = vadd.f32 %v638, %v1338
      %v1340 = vpop.f32.mrb[0].mxu0
      %v1341 = vadd.f32 %v638, %v1340
      %1342 = vmatprep.mubr.f32.mxu0 0.0
      %1343 = vmatmul.mubr.f32.gmra.mrb[0].mxu0 %v676
      %v1344 = vpop.f32.mrb[0].mxu0
      %v1345 = vadd.f32 %v643, %v1344
      %v1346 = vpop.f32.mrb[0].mxu0
      %v1347 = vadd.f32 %v643, %v1346
      %1348 = vmatprep.mubr.f32.mxu0 0.0
      %1349 = vmatmul.mubr.f32.gmra.mrb[0].mxu0 %v679
      %v1350 = vpop.f32.mrb[0].mxu0
      %v1351 = vadd.f32 %v648, %v1350
      %v1352 = vpop.f32.mrb[0].mxu0
      %v1353 = vadd.f32 %v648, %v1352
      %1354 = vmatprep.mubr.f32.mxu0 0.0
      %1355 = vmatmul.mubr.f32.gmra.mrb[0].mxu0 %v682
      %v1356 = vpop.f32.mrb[0].mxu0
      %v1357 = vadd.f32 %v653, %v1356
      %v1358 = vpop.f32.mrb[0].mxu0
      %v1359 = vadd.f32 %v653, %v1358
      %1360 = vmatprep.mubr.f32.mxu0 0.0
      %1361 = vmatmul.mubr.f32.gmra.mrb[0].mxu0 %v685
      %v1362 = vpop.f32.mrb[0].mxu0
      %v1363 = vadd.f32 %v658, %v1362
      %v1364 = vpop.f32.mrb[0].mxu0
      %v1365 = vadd.f32 %v658, %v1364
      %1366 = vmatprep.mubr.f32.mxu0 0.0
      %1367 = vmatmul.mubr.f32.gmra.mrb[0].mxu0 %v688
      %v1368 = vpop.f32.mrb[0].mxu0
      %v1369 = vadd.f32 %v663, %v1368
      %v1370 = vpop.f32.mrb[0].mxu0
      %v1371 = vadd.f32 %v663, %v1370
      %1372 = vdwg.mxu0
      %v1373 = vtanh.pop %v1327
      %v1374 = vtanh.pop %v1329
      %v1375 = vtanh.pop %v1333
      %v1376 = vtanh.pop %v1335
      %v1377 = vtanh.pop %v1339
      %v1378 = vtanh.pop %v1341
      %v1379 = vtanh.pop %v1345
      %v1380 = vtanh.pop %v1347
      %v1381 = vtanh.pop %v1351
      %v1382 = vtanh.pop %v1353
      %v1383 = vtanh.pop %v1357
      %v1384 = vtanh.pop %v1359
      %v1385 = vtanh.pop %v1363
      %v1386 = vtanh.pop %v1365
      %v1387 = vtanh.pop %v1369
      %v1388 = vtanh.pop %v1371
      %v1389 = vadd.f32 %v1373, %v1244
      %v1390 = vadd.f32 %v1374, %v1245
      %v1391 = vadd.f32 %v1375, %v1246
      %v1392 = vadd.f32 %v1376, %v1247
      %v1393 = vadd.f32 %v1377, %v1248
      %v1394 = vadd.f32 %v1378, %v1249
      %v1395 = vadd.f32 %v1379, %v1250
      %v1396 = vadd.f32 %v1380, %v1251
      %v1397 = vadd.f32 %v1381, %v1252
      %v1398 = vadd.f32 %v1382, %v1253
      %v1399 = vadd.f32 %v1383, %v1254
      %v1400 = vadd.f32 %v1384, %v1255
      %v1401 = vadd.f32 %v1385, %v1256
      %v1402 = vadd.f32 %v1386, %v1257
      %v1403 = vadd.f32 %v1387, %v1258
      %v1404 = vadd.f32 %v1388, %v1259
      %1405 = vmatprep.subr.mxu0 %v1390
      %1406 = vmatpush1.msra.mxu0 %v1389
      %1407 = vmatprep.subr.mxu0 %v1392
      %1408 = vmatpush1.msra.mxu0 %v1391
      %1409 = vmatprep.subr.mxu0 %v1394
      %1410 = vmatpush1.msra.mxu0 %v1393
      %1411 = vmatprep.subr.mxu0 %v1396
      %1412 = vmatpush1.msra.mxu0 %v1395
      %1413 = vmatprep.subr.mxu0 %v1398
      %1414 = vmatpush1.msra.mxu0 %v1397
      %1415 = vmatprep.subr.mxu0 %v1400
      %1416 = vmatpush1.msra.mxu0 %v1399
      %1417 = vmatprep.subr.mxu0 %v1402
      %1418 = vmatpush1.msra.mxu0 %v1401
      %1419 = vmatprep.subr.mxu0 %v1404
      %1420 = vmatpush1.msra.mxu0 %v1403
      %1421 = vmatprep.subr.mxu0 0.0
      %1422 = vmatpush1.msra.mxu0 0.0
      %1423 = vmatprep.subr.mxu0 0.0
      %1424 = vmatpush1.msra.mxu0 0.0
      %1425 = vmatprep.subr.mxu0 0.0
      %1426 = vmatpush1.msra.mxu0 0.0
      %1427 = vmatprep.subr.mxu0 0.0
      %1428 = vmatpush1.msra.mxu0 0.0
      %1429 = vmatprep.subr.mxu0 0.0
      %1430 = vmatpush1.msra.mxu0 0.0
      %1431 = vmatprep.subr.mxu0 0.0
      %1432 = vmatpush1.msra.mxu0 0.0
      %1433 = vmatprep.subr.mxu0 0.0
      %1434 = vmatpush1.msra.mxu0 0.0
      %1435 = vmatprep.subr.mxu0 0.0
      %1436 = vmatpush1.msra.mxu0 0.0
      %1437 = vmatprep.subr.mxu0 0.0
      %1438 = vmatpush1.msra.mxu0 0.0
      %1439 = vmatprep.subr.mxu0 0.0
      %1440 = vmatpush1.msra.mxu0 0.0
      %1441 = vmatprep.subr.mxu0 0.0
      %1442 = vmatpush1.msra.mxu0 0.0
      %1443 = vmatprep.subr.mxu0 0.0
      %1444 = vmatpush1.msra.mxu0 0.0
      %1445 = vmatprep.subr.mxu0 0.0
      %1446 = vmatpush1.msra.mxu0 0.0
      %1447 = vmatprep.subr.mxu0 0.0
      %1448 = vmatpush1.msra.mxu0 0.0
      %1449 = vmatprep.subr.mxu0 0.0
      %1450 = vmatpush1.msra.mxu0 0.0
      %1451 = vmatprep.subr.mxu0 0.0
      %1452 = vmatpush1.msra.mxu0 0.0
      %1453 = vmatprep.subr.mxu0 0.0
      %1454 = vmatpush1.msra.mxu0 0.0
      %1455 = vmatprep.subr.mxu0 0.0
      %1456 = vmatpush1.msra.mxu0 0.0
      %1457 = vmatprep.subr.mxu0 0.0
      %1458 = vmatpush1.msra.mxu0 0.0
      %1459 = vmatprep.subr.mxu0 0.0
      %1460 = vmatpush1.msra.mxu0 0.0
      %1461 = vmatprep.subr.mxu0 0.0
      %1462 = vmatpush1.msra.mxu0 0.0
      %1463 = vmatprep.subr.mxu0 0.0
      %1464 = vmatpush1.msra.mxu0 0.0
      %1465 = vmatprep.subr.mxu0 0.0
      %1466 = vmatpush1.msra.mxu0 0.0
      %1467 = vmatprep.subr.mxu0 0.0
      %1468 = vmatpush1.msra.mxu0 0.0
      %1469 = vmatprep.mubr.f32.mxu0 0.0
      %1470 = vmatmul.mubr.f32.gmra.mrb[0].mxu0 %v876
      %v1471 = vpop.f32.mrb[0].mxu0
      %v1472 = vadd.f32 %v838, %v1471
      %v1473 = vpop.f32.mrb[0].mxu0
      %v1474 = vadd.f32 %v838, %v1473
      %1475 = vmatprep.mubr.f32.mxu0 0.0
      %1476 = vmatmul.mubr.f32.gmra.mrb[0].mxu0 %v879
      %v1477 = vpop.f32.mrb[0].mxu0
      %v1478 = vadd.f32 %v843, %v1477
      %v1479 = vpop.f32.mrb[0].mxu0
      %v1480 = vadd.f32 %v843, %v1479
      %1481 = vmatprep.mubr.f32.mxu0 0.0
      %1482 = vmatmul.mubr.f32.gmra.mrb[0].mxu0 %v882
      %v1483 = vpop.f32.mrb[0].mxu0
      %v1484 = vadd.f32 %v848, %v1483
      %v1485 = vpop.f32.mrb[0].mxu0
      %v1486 = vadd.f32 %v848, %v1485
      %1487 = vmatprep.mubr.f32.mxu0 0.0
      %1488 = vmatmul.mubr.f32.gmra.mrb[0].mxu0 %v885
      %v1489 = vpop.f32.mrb[0].mxu0
      %v1490 = vadd.f32 %v853, %v1489
      %v1491 = vpop.f32.mrb[0].mxu0
      %v1492 = vadd.f32 %v853, %v1491
      %1493 = vmatprep.mubr.f32.mxu0 0.0
      %1494 = vmatmul.mubr.f32.gmra.mrb[0].mxu0 %v888
      %v1495 = vpop.f32.mrb[0].mxu0
      %v1496 = vadd.f32 %v858, %v1495
      %v1497 = vpop.f32.mrb[0].mxu0
      %v1498 = vadd.f32 %v858, %v1497
      %1499 = vmatprep.mubr.f32.mxu0 0.0
      %1500 = vmatmul.mubr.f32.gmra.mrb[0].mxu0 %v891
      %v1501 = vpop.f32.mrb[0].mxu0
      %v1502 = vadd.f32 %v863, %v1501
      %v1503 = vpop.f32.mrb[0].mxu0
      %v1504 = vadd.f32 %v863, %v1503
      %1505 = vmatprep.mubr.f32.mxu0 0.0
      %1506 = vmatmul.mubr.f32.gmra.mrb[0].mxu0 %v894
      %v1507 = vpop.f32.mrb[0].mxu0
      %v1508 = vadd.f32 %v868, %v1507
      %v1509 = vpop.f32.mrb[0].mxu0
      %v1510 = vadd.f32 %v868, %v1509
      %1511 = vmatprep.mubr.f32.mxu0 0.0
      %1512 = vmatmul.mubr.f32.gmra.mrb[0].mxu0 %v897
      %v1513 = vpop.f32.mrb[0].mxu0
      %v1514 = vadd.f32 %v873, %v1513
      %v1515 = vpop.f32.mrb[0].mxu0
      %v1516 = vadd.f32 %v873, %v1515
      %1517 = vdwg.mxu0
      %v1518 = vtanh.pop %v1472
      %v1519 = vtanh.pop %v1474
      %v1520 = vtanh.pop %v1478
      %v1521 = vtanh.pop %v1480
      %v1522 = vtanh.pop %v1484
      %v1523 = vtanh.pop %v1486
      %v1524 = vtanh.pop %v1490
      %v1525 = vtanh.pop %v1492
      %v1526 = vtanh.pop %v1496
      %v1527 = vtanh.pop %v1498
      %v1528 = vtanh.pop %v1502
      %v1529 = vtanh.pop %v1504
      %v1530 = vtanh.pop %v1508
      %v1531 = vtanh.pop %v1510
      %v1532 = vtanh.pop %v1514
      %v1533 = vtanh.pop %v1516
      %v1534 = vadd.f32 %v1518, %v1389
      %v1535 = vadd.f32 %v1519, %v1390
      %v1536 = vadd.f32 %v1520, %v1391
      %v1537 = vadd.f32 %v1521, %v1392
      %v1538 = vadd.f32 %v1522, %v1393
      %v1539 = vadd.f32 %v1523, %v1394
      %v1540 = vadd.f32 %v1524, %v1395
      %v1541 = vadd.f32 %v1525, %v1396
      %v1542 = vadd.f32 %v1526, %v1397
      %v1543 = vadd.f32 %v1527, %v1398
      %v1544 = vadd.f32 %v1528, %v1399
      %v1545 = vadd.f32 %v1529, %v1400
      %v1546 = vadd.f32 %v1530, %v1401
      %v1547 = vadd.f32 %v1531, %v1402
      %v1548 = vadd.f32 %v1532, %v1403
      %v1549 = vadd.f32 %v1533, %v1404
      %1550 = vmatprep.subr.mxu0 %v1535
      %1551 = vmatpush1.msra.mxu0 %v1534
      %1552 = vmatprep.subr.mxu0 %v1537
      %1553 = vmatpush1.msra.mxu0 %v1536
      %1554 = vmatprep.subr.mxu0 %v1539
      %1555 = vmatpush1.msra.mxu0 %v1538
      %1556 = vmatprep.subr.mxu0 %v1541
      %1557 = vmatpush1.msra.mxu0 %v1540
      %1558 = vmatprep.subr.mxu0 %v1543
      %1559 = vmatpush1.msra.mxu0 %v1542
      %1560 = vmatprep.subr.mxu0 %v1545
      %1561 = vmatpush1.msra.mxu0 %v1544
      %1562 = vmatprep.subr.mxu0 %v1547
      %1563 = vmatpush1.msra.mxu0 %v1546
      %1564 = vmatprep.subr.mxu0 %v1549
      %1565 = vmatpush1.msra.mxu0 %v1548
      %1566 = vmatprep.subr.mxu0 0.0
      %1567 = vmatpush1.msra.mxu0 0.0
      %1568 = vmatprep.subr.mxu0 0.0
      %1569 = vmatpush1.msra.mxu0 0.0
      %1570 = vmatprep.subr.mxu0 0.0
      %1571 = vmatpush1.msra.mxu0 0.0
      %1572 = vmatprep.subr.mxu0 0.0
      %1573 = vmatpush1.msra.mxu0 0.0
      %1574 = vmatprep.subr.mxu0 0.0
      %1575 = vmatpush1.msra.mxu0 0.0
      %1576 = vmatprep.subr.mxu0 0.0
      %1577 = vmatpush1.msra.mxu0 0.0
      %1578 = vmatprep.subr.mxu0 0.0
      %1579 = vmatpush1.msra.mxu0 0.0
      %1580 = vmatprep.subr.mxu0 0.0
      %1581 = vmatpush1.msra.mxu0 0.0
      %1582 = vmatprep.subr.mxu0 0.0
      %1583 = vmatpush1.msra.mxu0 0.0
      %1584 = vmatprep.subr.mxu0 0.0
      %1585 = vmatpush1.msra.mxu0 0.0
      %1586 = vmatprep.subr.mxu0 0.0
      %1587 = vmatpush1.msra.mxu0 0.0
      %1588 = vmatprep.subr.mxu0 0.0
      %1589 = vmatpush1.msra.mxu0 0.0
      %1590 = vmatprep.subr.mxu0 0.0
      %1591 = vmatpush1.msra.mxu0 0.0
      %1592 = vmatprep.subr.mxu0 0.0
      %1593 = vmatpush1.msra.mxu0 0.0
      %1594 = vmatprep.subr.mxu0 0.0
      %1595 = vmatpush1.msra.mxu0 0.0
      %1596 = vmatprep.subr.mxu0 0.0
      %1597 = vmatpush1.msra.mxu0 0.0
      %1598 = vmatprep.subr.mxu0 0.0
      %1599 = vmatpush1.msra.mxu0 0.0
      %1600 = vmatprep.subr.mxu0 0.0
      %1601 = vmatpush1.msra.mxu0 0.0
      %1602 = vmatprep.subr.mxu0 0.0
      %1603 = vmatpush1.msra.mxu0 0.0
      %1604 = vmatprep.subr.mxu0 0.0
      %1605 = vmatpush1.msra.mxu0 0.0
      %1606 = vmatprep.subr.mxu0 0.0
      %1607 = vmatpush1.msra.mxu0 0.0
      %1608 = vmatprep.subr.mxu0 0.0
      %1609 = vmatpush1.msra.mxu0 0.0
      %1610 = vmatprep.subr.mxu0 0.0
      %1611 = vmatpush1.msra.mxu0 0.0
      %1612 = vmatprep.subr.mxu0 0.0
      %1613 = vmatpush1.msra.mxu0 0.0
      %1614 = vmatprep.mubr.f32.mxu0 0.0
      %1615 = vmatmul.mubr.f32.gmra.mrb[0].mxu0 %v1045
      %v1616 = vpop.f32.mrb[0].mxu0
      %v1617 = vadd.f32 %v394, %v1616
      %v1618 = vpop.f32.mrb[0].mxu0
      %v1619 = vadd.f32 %v394, %v1618
      %1620 = vdwg.mxu0
      %v1623 = vcombine.low %v1617, %v1619
      %v1625 = vunpack.c.l.s4 1966171168
      %v1626 = vunpack.c.0.s8 %v1625
      %v1627 = vlaneseq
      %v1628 = vshrl.u32 %v1627, 7
      %v1629 = vsub.s32 %v1626, %v1628
      %v1630 = vrot.slane %v1623, %v1629
      %v1632 = vunpack.c.l.s4 1966171168
      %v1633 = vunpack.c.0.s8 %v1632
      %v1634 = vlaneseq
      %v1635 = vshrl.u32 %v1634, 7
      %v1636 = vsub.s32 %v1633, %v1635
      %v1637 = vrot.slane %v1630, %v1636
      %s1639 = scalar_lea.vmem %s334, 2
      %1640 = vst.msk [vmem:[%s1639] sm:$0x3] %vm1139, %v1637
      %s1641 = scalar_lea.vmem %s329, 8
      %v1642 = vld [vmem:[%s1641] sm:$0xf]
      %v1644 = vlaneseq
      %v1645 = vshrl.u32 %v1644, 7
      %v1646 = vsub.s32 0, %v1645
      %v1647 = vrot.slane %v1642, %v1646
      %v1648 = vlaneseq
      %v1649 = vshrl.u32 %v1648, 7
      %v1650 = vsub.s32 2, %v1649
      %v1651 = vrot.slane %v1642, %v1650
      %v1654 = vlaneseq
      %v1655 = vshrl.u32 %v1654, 7
      %v1656 = vsub.s32 0, %v1655
      %v1657 = vrot.slane %v1647, %v1656
      %v1658 = vlaneseq
      %v1659 = vshrl.u32 %v1658, 7
      %v1660 = vsub.s32 0, %v1659
      %v1661 = vrot.slane %v1651, %v1660
      %v1662 = vmul.f32 %v399, %v1657
      %v1663 = vmul.f32 %v399, %v1661
      %v1664 = vmul.f32 %v404, %v1657
      %v1665 = vmul.f32 %v404, %v1661
      %v1666 = vmul.f32 %v409, %v1657
      %v1667 = vmul.f32 %v409, %v1661
      %v1668 = vmul.f32 %v414, %v1657
      %v1669 = vmul.f32 %v414, %v1661
      %v1670 = vmul.f32 %v419, %v1657
      %v1671 = vmul.f32 %v419, %v1661
      %v1672 = vmul.f32 %v424, %v1657
      %v1673 = vmul.f32 %v424, %v1661
      %v1674 = vmul.f32 %v429, %v1657
      %v1675 = vmul.f32 %v429, %v1661
      %v1676 = vmul.f32 %v434, %v1657
      %v1677 = vmul.f32 %v434, %v1661
      %v1678 = vlaneseq
      %v1679 = vshrl.u32 %v1678, 7
      %v1680 = vsub.s32 1, %v1679
      %v1681 = vrot.slane %v1642, %v1680
      %v1682 = vlaneseq
      %v1683 = vshrl.u32 %v1682, 7
      %v1684 = vsub.s32 3, %v1683
      %v1685 = vrot.slane %v1642, %v1684
      %v1688 = vlaneseq
      %v1689 = vshrl.u32 %v1688, 7
      %v1690 = vsub.s32 1, %v1689
      %v1691 = vrot.slane %v1681, %v1690
      %v1692 = vlaneseq
      %v1693 = vshrl.u32 %v1692, 7
      %v1694 = vsub.s32 1, %v1693
      %v1695 = vrot.slane %v1685, %v1694
      %v1696 = vmul.f32 %v473, %v1691
      %v1697 = vmul.f32 %v473, %v1695
      %v1698 = vmul.f32 %v477, %v1691
      %v1699 = vmul.f32 %v477, %v1695
      %v1700 = vmul.f32 %v481, %v1691
      %v1701 = vmul.f32 %v481, %v1695
      %v1702 = vmul.f32 %v485, %v1691
      %v1703 = vmul.f32 %v485, %v1695
      %v1704 = vmul.f32 %v489, %v1691
      %v1705 = vmul.f32 %v489, %v1695
      %v1706 = vmul.f32 %v493, %v1691
      %v1707 = vmul.f32 %v493, %v1695
      %v1708 = vmul.f32 %v497, %v1691
      %v1709 = vmul.f32 %v497, %v1695
      %v1710 = vmul.f32 %v501, %v1691
      %v1711 = vmul.f32 %v501, %v1695
      %v1712 = vadd.f32 %v1662, %v1696
      %v1713 = vadd.f32 %v1663, %v1697
      %v1714 = vadd.f32 %v1664, %v1698
      %v1715 = vadd.f32 %v1665, %v1699
      %v1716 = vadd.f32 %v1666, %v1700
      %v1717 = vadd.f32 %v1667, %v1701
      %v1718 = vadd.f32 %v1668, %v1702
      %v1719 = vadd.f32 %v1669, %v1703
      %v1720 = vadd.f32 %v1670, %v1704
      %v1721 = vadd.f32 %v1671, %v1705
      %v1722 = vadd.f32 %v1672, %v1706
      %v1723 = vadd.f32 %v1673, %v1707
      %v1724 = vadd.f32 %v1674, %v1708
      %v1725 = vadd.f32 %v1675, %v1709
      %v1726 = vadd.f32 %v1676, %v1710
      %v1727 = vadd.f32 %v1677, %v1711
      %v1728 = vadd.f32 %v1712, %v556
      %v1729 = vadd.f32 %v1713, %v556
      %v1730 = vadd.f32 %v1714, %v561
      %v1731 = vadd.f32 %v1715, %v561
      %v1732 = vadd.f32 %v1716, %v566
      %v1733 = vadd.f32 %v1717, %v566
      %v1734 = vadd.f32 %v1718, %v571
      %v1735 = vadd.f32 %v1719, %v571
      %v1736 = vadd.f32 %v1720, %v576
      %v1737 = vadd.f32 %v1721, %v576
      %v1738 = vadd.f32 %v1722, %v581
      %v1739 = vadd.f32 %v1723, %v581
      %v1740 = vadd.f32 %v1724, %v586
      %v1741 = vadd.f32 %v1725, %v586
      %v1742 = vadd.f32 %v1726, %v591
      %v1743 = vadd.f32 %v1727, %v591
      %v1744 = vtanh.pop %v1728
      %v1745 = vtanh.pop %v1729
      %v1746 = vtanh.pop %v1730
      %v1747 = vtanh.pop %v1731
      %v1748 = vtanh.pop %v1732
      %v1749 = vtanh.pop %v1733
      %v1750 = vtanh.pop %v1734
      %v1751 = vtanh.pop %v1735
      %v1752 = vtanh.pop %v1736
      %v1753 = vtanh.pop %v1737
      %v1754 = vtanh.pop %v1738
      %v1755 = vtanh.pop %v1739
      %v1756 = vtanh.pop %v1740
      %v1757 = vtanh.pop %v1741
      %v1758 = vtanh.pop %v1742
      %v1759 = vtanh.pop %v1743
      %1760 = vmatprep.subr.mxu0 %v1745
      %1761 = vmatpush1.msra.mxu0 %v1744
      %1762 = vmatprep.subr.mxu0 %v1747
      %1763 = vmatpush1.msra.mxu0 %v1746
      %1764 = vmatprep.subr.mxu0 %v1749
      %1765 = vmatpush1.msra.mxu0 %v1748
      %1766 = vmatprep.subr.mxu0 %v1751
      %1767 = vmatpush1.msra.mxu0 %v1750
      %1768 = vmatprep.subr.mxu0 %v1753
      %1769 = vmatpush1.msra.mxu0 %v1752
      %1770 = vmatprep.subr.mxu0 %v1755
      %1771 = vmatpush1.msra.mxu0 %v1754
      %1772 = vmatprep.subr.mxu0 %v1757
      %1773 = vmatpush1.msra.mxu0 %v1756
      %1774 = vmatprep.subr.mxu0 %v1759
      %1775 = vmatpush1.msra.mxu0 %v1758
      %1776 = vmatprep.subr.mxu0 0.0
      %1777 = vmatpush1.msra.mxu0 0.0
      %1778 = vmatprep.subr.mxu0 0.0
      %1779 = vmatpush1.msra.mxu0 0.0
      %1780 = vmatprep.subr.mxu0 0.0
      %1781 = vmatpush1.msra.mxu0 0.0
      %1782 = vmatprep.subr.mxu0 0.0
      %1783 = vmatpush1.msra.mxu0 0.0
      %1784 = vmatprep.subr.mxu0 0.0
      %1785 = vmatpush1.msra.mxu0 0.0
      %1786 = vmatprep.subr.mxu0 0.0
      %1787 = vmatpush1.msra.mxu0 0.0
      %1788 = vmatprep.subr.mxu0 0.0
      %1789 = vmatpush1.msra.mxu0 0.0
      %1790 = vmatprep.subr.mxu0 0.0
      %1791 = vmatpush1.msra.mxu0 0.0
      %1792 = vmatprep.subr.mxu0 0.0
      %1793 = vmatpush1.msra.mxu0 0.0
      %1794 = vmatprep.subr.mxu0 0.0
      %1795 = vmatpush1.msra.mxu0 0.0
      %1796 = vmatprep.subr.mxu0 0.0
      %1797 = vmatpush1.msra.mxu0 0.0
      %1798 = vmatprep.subr.mxu0 0.0
      %1799 = vmatpush1.msra.mxu0 0.0
      %1800 = vmatprep.subr.mxu0 0.0
      %1801 = vmatpush1.msra.mxu0 0.0
      %1802 = vmatprep.subr.mxu0 0.0
      %1803 = vmatpush1.msra.mxu0 0.0
      %1804 = vmatprep.subr.mxu0 0.0
      %1805 = vmatpush1.msra.mxu0 0.0
      %1806 = vmatprep.subr.mxu0 0.0
      %1807 = vmatpush1.msra.mxu0 0.0
      %1808 = vmatprep.subr.mxu0 0.0
      %1809 = vmatpush1.msra.mxu0 0.0
      %1810 = vmatprep.subr.mxu0 0.0
      %1811 = vmatpush1.msra.mxu0 0.0
      %1812 = vmatprep.subr.mxu0 0.0
      %1813 = vmatpush1.msra.mxu0 0.0
      %1814 = vmatprep.subr.mxu0 0.0
      %1815 = vmatpush1.msra.mxu0 0.0
      %1816 = vmatprep.subr.mxu0 0.0
      %1817 = vmatpush1.msra.mxu0 0.0
      %1818 = vmatprep.subr.mxu0 0.0
      %1819 = vmatpush1.msra.mxu0 0.0
      %1820 = vmatprep.subr.mxu0 0.0
      %1821 = vmatpush1.msra.mxu0 0.0
      %1822 = vmatprep.subr.mxu0 0.0
      %1823 = vmatpush1.msra.mxu0 0.0
      %1824 = vmatprep.mubr.f32.mxu0 0.0
      %1825 = vmatmul.mubr.f32.gmra.mrb[0].mxu0 %v667
      %v1826 = vpop.f32.mrb[0].mxu0
      %v1827 = vadd.f32 %v628, %v1826
      %v1828 = vpop.f32.mrb[0].mxu0
      %v1829 = vadd.f32 %v628, %v1828
      %1830 = vmatprep.mubr.f32.mxu0 0.0
      %1831 = vmatmul.mubr.f32.gmra.mrb[0].mxu0 %v670
      %v1832 = vpop.f32.mrb[0].mxu0
      %v1833 = vadd.f32 %v633, %v1832
      %v1834 = vpop.f32.mrb[0].mxu0
      %v1835 = vadd.f32 %v633, %v1834
      %1836 = vmatprep.mubr.f32.mxu0 0.0
      %1837 = vmatmul.mubr.f32.gmra.mrb[0].mxu0 %v673
      %v1838 = vpop.f32.mrb[0].mxu0
      %v1839 = vadd.f32 %v638, %v1838
      %v1840 = vpop.f32.mrb[0].mxu0
      %v1841 = vadd.f32 %v638, %v1840
      %1842 = vmatprep.mubr.f32.mxu0 0.0
      %1843 = vmatmul.mubr.f32.gmra.mrb[0].mxu0 %v676
      %v1844 = vpop.f32.mrb[0].mxu0
      %v1845 = vadd.f32 %v643, %v1844
      %v1846 = vpop.f32.mrb[0].mxu0
      %v1847 = vadd.f32 %v643, %v1846
      %1848 = vmatprep.mubr.f32.mxu0 0.0
      %1849 = vmatmul.mubr.f32.gmra.mrb[0].mxu0 %v679
      %v1850 = vpop.f32.mrb[0].mxu0
      %v1851 = vadd.f32 %v648, %v1850
      %v1852 = vpop.f32.mrb[0].mxu0
      %v1853 = vadd.f32 %v648, %v1852
      %1854 = vmatprep.mubr.f32.mxu0 0.0
      %1855 = vmatmul.mubr.f32.gmra.mrb[0].mxu0 %v682
      %v1856 = vpop.f32.mrb[0].mxu0
      %v1857 = vadd.f32 %v653, %v1856
      %v1858 = vpop.f32.mrb[0].mxu0
      %v1859 = vadd.f32 %v653, %v1858
      %1860 = vmatprep.mubr.f32.mxu0 0.0
      %1861 = vmatmul.mubr.f32.gmra.mrb[0].mxu0 %v685
      %v1862 = vpop.f32.mrb[0].mxu0
      %v1863 = vadd.f32 %v658, %v1862
      %v1864 = vpop.f32.mrb[0].mxu0
      %v1865 = vadd.f32 %v658, %v1864
      %1866 = vmatprep.mubr.f32.mxu0 0.0
      %1867 = vmatmul.mubr.f32.gmra.mrb[0].mxu0 %v688
      %v1868 = vpop.f32.mrb[0].mxu0
      %v1869 = vadd.f32 %v663, %v1868
      %v1870 = vpop.f32.mrb[0].mxu0
      %v1871 = vadd.f32 %v663, %v1870
      %1872 = vdwg.mxu0
      %v1873 = vtanh.pop %v1827
      %v1874 = vtanh.pop %v1829
      %v1875 = vtanh.pop %v1833
      %v1876 = vtanh.pop %v1835
      %v1877 = vtanh.pop %v1839
      %v1878 = vtanh.pop %v1841
      %v1879 = vtanh.pop %v1845
      %v1880 = vtanh.pop %v1847
      %v1881 = vtanh.pop %v1851
      %v1882 = vtanh.pop %v1853
      %v1883 = vtanh.pop %v1857
      %v1884 = vtanh.pop %v1859
      %v1885 = vtanh.pop %v1863
      %v1886 = vtanh.pop %v1865
      %v1887 = vtanh.pop %v1869
      %v1888 = vtanh.pop %v1871
      %v1889 = vadd.f32 %v1873, %v1744
      %v1890 = vadd.f32 %v1874, %v1745
      %v1891 = vadd.f32 %v1875, %v1746
      %v1892 = vadd.f32 %v1876, %v1747
      %v1893 = vadd.f32 %v1877, %v1748
      %v1894 = vadd.f32 %v1878, %v1749
      %v1895 = vadd.f32 %v1879, %v1750
      %v1896 = vadd.f32 %v1880, %v1751
      %v1897 = vadd.f32 %v1881, %v1752
      %v1898 = vadd.f32 %v1882, %v1753
      %v1899 = vadd.f32 %v1883, %v1754
      %v1900 = vadd.f32 %v1884, %v1755
      %v1901 = vadd.f32 %v1885, %v1756
      %v1902 = vadd.f32 %v1886, %v1757
      %v1903 = vadd.f32 %v1887, %v1758
      %v1904 = vadd.f32 %v1888, %v1759
      %1905 = vmatprep.subr.mxu0 %v1890
      %1906 = vmatpush1.msra.mxu0 %v1889
      %1907 = vmatprep.subr.mxu0 %v1892
      %1908 = vmatpush1.msra.mxu0 %v1891
      %1909 = vmatprep.subr.mxu0 %v1894
      %1910 = vmatpush1.msra.mxu0 %v1893
      %1911 = vmatprep.subr.mxu0 %v1896
      %1912 = vmatpush1.msra.mxu0 %v1895
      %1913 = vmatprep.subr.mxu0 %v1898
      %1914 = vmatpush1.msra.mxu0 %v1897
      %1915 = vmatprep.subr.mxu0 %v1900
      %1916 = vmatpush1.msra.mxu0 %v1899
      %1917 = vmatprep.subr.mxu0 %v1902
      %1918 = vmatpush1.msra.mxu0 %v1901
      %1919 = vmatprep.subr.mxu0 %v1904
      %1920 = vmatpush1.msra.mxu0 %v1903
      %1921 = vmatprep.subr.mxu0 0.0
      %1922 = vmatpush1.msra.mxu0 0.0
      %1923 = vmatprep.subr.mxu0 0.0
      %1924 = vmatpush1.msra.mxu0 0.0
      %1925 = vmatprep.subr.mxu0 0.0
      %1926 = vmatpush1.msra.mxu0 0.0
      %1927 = vmatprep.subr.mxu0 0.0
      %1928 = vmatpush1.msra.mxu0 0.0
      %1929 = vmatprep.subr.mxu0 0.0
      %1930 = vmatpush1.msra.mxu0 0.0
      %1931 = vmatprep.subr.mxu0 0.0
      %1932 = vmatpush1.msra.mxu0 0.0
      %1933 = vmatprep.subr.mxu0 0.0
      %1934 = vmatpush1.msra.mxu0 0.0
      %1935 = vmatprep.subr.mxu0 0.0
      %1936 = vmatpush1.msra.mxu0 0.0
      %1937 = vmatprep.subr.mxu0 0.0
      %1938 = vmatpush1.msra.mxu0 0.0
      %1939 = vmatprep.subr.mxu0 0.0
      %1940 = vmatpush1.msra.mxu0 0.0
      %1941 = vmatprep.subr.mxu0 0.0
      %1942 = vmatpush1.msra.mxu0 0.0
      %1943 = vmatprep.subr.mxu0 0.0
      %1944 = vmatpush1.msra.mxu0 0.0
      %1945 = vmatprep.subr.mxu0 0.0
      %1946 = vmatpush1.msra.mxu0 0.0
      %1947 = vmatprep.subr.mxu0 0.0
      %1948 = vmatpush1.msra.mxu0 0.0
      %1949 = vmatprep.subr.mxu0 0.0
      %1950 = vmatpush1.msra.mxu0 0.0
      %1951 = vmatprep.subr.mxu0 0.0
      %1952 = vmatpush1.msra.mxu0 0.0
      %1953 = vmatprep.subr.mxu0 0.0
      %1954 = vmatpush1.msra.mxu0 0.0
      %1955 = vmatprep.subr.mxu0 0.0
      %1956 = vmatpush1.msra.mxu0 0.0
      %1957 = vmatprep.subr.mxu0 0.0
      %1958 = vmatpush1.msra.mxu0 0.0
      %1959 = vmatprep.subr.mxu0 0.0
      %1960 = vmatpush1.msra.mxu0 0.0
      %1961 = vmatprep.subr.mxu0 0.0
      %1962 = vmatpush1.msra.mxu0 0.0
      %1963 = vmatprep.subr.mxu0 0.0
      %1964 = vmatpush1.msra.mxu0 0.0
      %1965 = vmatprep.subr.mxu0 0.0
      %1966 = vmatpush1.msra.mxu0 0.0
      %1967 = vmatprep.subr.mxu0 0.0
      %1968 = vmatpush1.msra.mxu0 0.0
      %1969 = vmatprep.mubr.f32.mxu0 0.0
      %1970 = vmatmul.mubr.f32.gmra.mrb[0].mxu0 %v876
      %v1971 = vpop.f32.mrb[0].mxu0
      %v1972 = vadd.f32 %v838, %v1971
      %v1973 = vpop.f32.mrb[0].mxu0
      %v1974 = vadd.f32 %v838, %v1973
      %1975 = vmatprep.mubr.f32.mxu0 0.0
      %1976 = vmatmul.mubr.f32.gmra.mrb[0].mxu0 %v879
      %v1977 = vpop.f32.mrb[0].mxu0
      %v1978 = vadd.f32 %v843, %v1977
      %v1979 = vpop.f32.mrb[0].mxu0
      %v1980 = vadd.f32 %v843, %v1979
      %1981 = vmatprep.mubr.f32.mxu0 0.0
      %1982 = vmatmul.mubr.f32.gmra.mrb[0].mxu0 %v882
      %v1983 = vpop.f32.mrb[0].mxu0
      %v1984 = vadd.f32 %v848, %v1983
      %v1985 = vpop.f32.mrb[0].mxu0
      %v1986 = vadd.f32 %v848, %v1985
      %1987 = vmatprep.mubr.f32.mxu0 0.0
      %1988 = vmatmul.mubr.f32.gmra.mrb[0].mxu0 %v885
      %v1989 = vpop.f32.mrb[0].mxu0
      %v1990 = vadd.f32 %v853, %v1989
      %v1991 = vpop.f32.mrb[0].mxu0
      %v1992 = vadd.f32 %v853, %v1991
      %1993 = vmatprep.mubr.f32.mxu0 0.0
      %1994 = vmatmul.mubr.f32.gmra.mrb[0].mxu0 %v888
      %v1995 = vpop.f32.mrb[0].mxu0
      %v1996 = vadd.f32 %v858, %v1995
      %v1997 = vpop.f32.mrb[0].mxu0
      %v1998 = vadd.f32 %v858, %v1997
      %1999 = vmatprep.mubr.f32.mxu0 0.0
      %2000 = vmatmul.mubr.f32.gmra.mrb[0].mxu0 %v891
      %v2001 = vpop.f32.mrb[0].mxu0
      %v2002 = vadd.f32 %v863, %v2001
      %v2003 = vpop.f32.mrb[0].mxu0
      %v2004 = vadd.f32 %v863, %v2003
      %2005 = vmatprep.mubr.f32.mxu0 0.0
      %2006 = vmatmul.mubr.f32.gmra.mrb[0].mxu0 %v894
      %v2007 = vpop.f32.mrb[0].mxu0
      %v2008 = vadd.f32 %v868, %v2007
      %v2009 = vpop.f32.mrb[0].mxu0
      %v2010 = vadd.f32 %v868, %v2009
      %2011 = vmatprep.mubr.f32.mxu0 0.0
      %2012 = vmatmul.mubr.f32.gmra.mrb[0].mxu0 %v897
      %v2013 = vpop.f32.mrb[0].mxu0
      %v2014 = vadd.f32 %v873, %v2013
      %v2015 = vpop.f32.mrb[0].mxu0
      %v2016 = vadd.f32 %v873, %v2015
      %2017 = vdwg.mxu0
      %v2018 = vtanh.pop %v1972
      %v2019 = vtanh.pop %v1974
      %v2020 = vtanh.pop %v1978
      %v2021 = vtanh.pop %v1980
      %v2022 = vtanh.pop %v1984
      %v2023 = vtanh.pop %v1986
      %v2024 = vtanh.pop %v1990
      %v2025 = vtanh.pop %v1992
      %v2026 = vtanh.pop %v1996
      %v2027 = vtanh.pop %v1998
      %v2028 = vtanh.pop %v2002
      %v2029 = vtanh.pop %v2004
      %v2030 = vtanh.pop %v2008
      %v2031 = vtanh.pop %v2010
      %v2032 = vtanh.pop %v2014
      %v2033 = vtanh.pop %v2016
      %v2034 = vadd.f32 %v2018, %v1889
      %v2035 = vadd.f32 %v2019, %v1890
      %v2036 = vadd.f32 %v2020, %v1891
      %v2037 = vadd.f32 %v2021, %v1892
      %v2038 = vadd.f32 %v2022, %v1893
      %v2039 = vadd.f32 %v2023, %v1894
      %v2040 = vadd.f32 %v2024, %v1895
      %v2041 = vadd.f32 %v2025, %v1896
      %v2042 = vadd.f32 %v2026, %v1897
      %v2043 = vadd.f32 %v2027, %v1898
      %v2044 = vadd.f32 %v2028, %v1899
      %v2045 = vadd.f32 %v2029, %v1900
      %v2046 = vadd.f32 %v2030, %v1901
      %v2047 = vadd.f32 %v2031, %v1902
      %v2048 = vadd.f32 %v2032, %v1903
      %v2049 = vadd.f32 %v2033, %v1904
      %2050 = vmatprep.subr.mxu0 %v2035
      %2051 = vmatpush1.msra.mxu0 %v2034
      %2052 = vmatprep.subr.mxu0 %v2037
      %2053 = vmatpush1.msra.mxu0 %v2036
      %2054 = vmatprep.subr.mxu0 %v2039
      %2055 = vmatpush1.msra.mxu0 %v2038
      %2056 = vmatprep.subr.mxu0 %v2041
      %2057 = vmatpush1.msra.mxu0 %v2040
      %2058 = vmatprep.subr.mxu0 %v2043
      %2059 = vmatpush1.msra.mxu0 %v2042
      %2060 = vmatprep.subr.mxu0 %v2045
      %2061 = vmatpush1.msra.mxu0 %v2044
      %2062 = vmatprep.subr.mxu0 %v2047
      %2063 = vmatpush1.msra.mxu0 %v2046
      %2064 = vmatprep.subr.mxu0 %v2049
      %2065 = vmatpush1.msra.mxu0 %v2048
      %2066 = vmatprep.subr.mxu0 0.0
      %2067 = vmatpush1.msra.mxu0 0.0
      %2068 = vmatprep.subr.mxu0 0.0
      %2069 = vmatpush1.msra.mxu0 0.0
      %2070 = vmatprep.subr.mxu0 0.0
      %2071 = vmatpush1.msra.mxu0 0.0
      %2072 = vmatprep.subr.mxu0 0.0
      %2073 = vmatpush1.msra.mxu0 0.0
      %2074 = vmatprep.subr.mxu0 0.0
      %2075 = vmatpush1.msra.mxu0 0.0
      %2076 = vmatprep.subr.mxu0 0.0
      %2077 = vmatpush1.msra.mxu0 0.0
      %2078 = vmatprep.subr.mxu0 0.0
      %2079 = vmatpush1.msra.mxu0 0.0
      %2080 = vmatprep.subr.mxu0 0.0
      %2081 = vmatpush1.msra.mxu0 0.0
      %2082 = vmatprep.subr.mxu0 0.0
      %2083 = vmatpush1.msra.mxu0 0.0
      %2084 = vmatprep.subr.mxu0 0.0
      %2085 = vmatpush1.msra.mxu0 0.0
      %2086 = vmatprep.subr.mxu0 0.0
      %2087 = vmatpush1.msra.mxu0 0.0
      %2088 = vmatprep.subr.mxu0 0.0
      %2089 = vmatpush1.msra.mxu0 0.0
      %2090 = vmatprep.subr.mxu0 0.0
      %2091 = vmatpush1.msra.mxu0 0.0
      %2092 = vmatprep.subr.mxu0 0.0
      %2093 = vmatpush1.msra.mxu0 0.0
      %2094 = vmatprep.subr.mxu0 0.0
      %2095 = vmatpush1.msra.mxu0 0.0
      %2096 = vmatprep.subr.mxu0 0.0
      %2097 = vmatpush1.msra.mxu0 0.0
      %2098 = vmatprep.subr.mxu0 0.0
      %2099 = vmatpush1.msra.mxu0 0.0
      %2100 = vmatprep.subr.mxu0 0.0
      %2101 = vmatpush1.msra.mxu0 0.0
      %2102 = vmatprep.subr.mxu0 0.0
      %2103 = vmatpush1.msra.mxu0 0.0
      %2104 = vmatprep.subr.mxu0 0.0
      %2105 = vmatpush1.msra.mxu0 0.0
      %2106 = vmatprep.subr.mxu0 0.0
      %2107 = vmatpush1.msra.mxu0 0.0
      %2108 = vmatprep.subr.mxu0 0.0
      %2109 = vmatpush1.msra.mxu0 0.0
      %2110 = vmatprep.subr.mxu0 0.0
      %2111 = vmatpush1.msra.mxu0 0.0
      %2112 = vmatprep.subr.mxu0 0.0
      %2113 = vmatpush1.msra.mxu0 0.0
      %2114 = vmatprep.mubr.f32.mxu0 0.0
      %2115 = vmatmul.mubr.f32.gmra.mrb[0].mxu0 %v1045
      %v2116 = vpop.f32.mrb[0].mxu0
      %v2117 = vadd.f32 %v394, %v2116
      %v2118 = vpop.f32.mrb[0].mxu0
      %v2119 = vadd.f32 %v394, %v2118
      %2120 = vdwg.mxu0
      %v2123 = vcombine.low %v2117, %v2119
      %v2125 = vunpack.c.l.s4 1966171168
      %v2126 = vunpack.c.0.s8 %v2125
      %v2127 = vlaneseq
      %v2128 = vshrl.u32 %v2127, 7
      %v2129 = vsub.s32 %v2126, %v2128
      %v2130 = vrot.slane %v2123, %v2129
      %v2132 = vunpack.c.l.s4 1966171168
      %v2133 = vunpack.c.0.s8 %v2132
      %v2134 = vlaneseq
      %v2135 = vshrl.u32 %v2134, 7
      %v2136 = vsub.s32 %v2133, %v2135
      %v2137 = vrot.slane %v2130, %v2136
      %s2139 = scalar_lea.vmem %s334, 4
      %2140 = vst.msk [vmem:[%s2139] sm:$0x3] %vm1139, %v2137
      %s2141 = scalar_lea.vmem %s329, 12
      %v2142 = vld [vmem:[%s2141] sm:$0xf]
      %v2144 = vlaneseq
      %v2145 = vshrl.u32 %v2144, 7
      %v2146 = vsub.s32 0, %v2145
      %v2147 = vrot.slane %v2142, %v2146
      %v2148 = vlaneseq
      %v2149 = vshrl.u32 %v2148, 7
      %v2150 = vsub.s32 2, %v2149
      %v2151 = vrot.slane %v2142, %v2150
      %v2154 = vlaneseq
      %v2155 = vshrl.u32 %v2154, 7
      %v2156 = vsub.s32 0, %v2155
      %v2157 = vrot.slane %v2147, %v2156
      %v2158 = vlaneseq
      %v2159 = vshrl.u32 %v2158, 7
      %v2160 = vsub.s32 0, %v2159
      %v2161 = vrot.slane %v2151, %v2160
      %v2162 = vmul.f32 %v399, %v2157
      %v2163 = vmul.f32 %v399, %v2161
      %v2164 = vmul.f32 %v404, %v2157
      %v2165 = vmul.f32 %v404, %v2161
      %v2166 = vmul.f32 %v409, %v2157
      %v2167 = vmul.f32 %v409, %v2161
      %v2168 = vmul.f32 %v414, %v2157
      %v2169 = vmul.f32 %v414, %v2161
      %v2170 = vmul.f32 %v419, %v2157
      %v2171 = vmul.f32 %v419, %v2161
      %v2172 = vmul.f32 %v424, %v2157
      %v2173 = vmul.f32 %v424, %v2161
      %v2174 = vmul.f32 %v429, %v2157
      %v2175 = vmul.f32 %v429, %v2161
      %v2176 = vmul.f32 %v434, %v2157
      %v2177 = vmul.f32 %v434, %v2161
      %v2178 = vlaneseq
      %v2179 = vshrl.u32 %v2178, 7
      %v2180 = vsub.s32 1, %v2179
      %v2181 = vrot.slane %v2142, %v2180
      %v2182 = vlaneseq
      %v2183 = vshrl.u32 %v2182, 7
      %v2184 = vsub.s32 3, %v2183
      %v2185 = vrot.slane %v2142, %v2184
      %v2188 = vlaneseq
      %v2189 = vshrl.u32 %v2188, 7
      %v2190 = vsub.s32 1, %v2189
      %v2191 = vrot.slane %v2181, %v2190
      %v2192 = vlaneseq
      %v2193 = vshrl.u32 %v2192, 7
      %v2194 = vsub.s32 1, %v2193
      %v2195 = vrot.slane %v2185, %v2194
      %v2196 = vmul.f32 %v473, %v2191
      %v2197 = vmul.f32 %v473, %v2195
      %v2198 = vmul.f32 %v477, %v2191
      %v2199 = vmul.f32 %v477, %v2195
      %v2200 = vmul.f32 %v481, %v2191
      %v2201 = vmul.f32 %v481, %v2195
      %v2202 = vmul.f32 %v485, %v2191
      %v2203 = vmul.f32 %v485, %v2195
      %v2204 = vmul.f32 %v489, %v2191
      %v2205 = vmul.f32 %v489, %v2195
      %v2206 = vmul.f32 %v493, %v2191
      %v2207 = vmul.f32 %v493, %v2195
      %v2208 = vmul.f32 %v497, %v2191
      %v2209 = vmul.f32 %v497, %v2195
      %v2210 = vmul.f32 %v501, %v2191
      %v2211 = vmul.f32 %v501, %v2195
      %v2212 = vadd.f32 %v2162, %v2196
      %v2213 = vadd.f32 %v2163, %v2197
      %v2214 = vadd.f32 %v2164, %v2198
      %v2215 = vadd.f32 %v2165, %v2199
      %v2216 = vadd.f32 %v2166, %v2200
      %v2217 = vadd.f32 %v2167, %v2201
      %v2218 = vadd.f32 %v2168, %v2202
      %v2219 = vadd.f32 %v2169, %v2203
      %v2220 = vadd.f32 %v2170, %v2204
      %v2221 = vadd.f32 %v2171, %v2205
      %v2222 = vadd.f32 %v2172, %v2206
      %v2223 = vadd.f32 %v2173, %v2207
      %v2224 = vadd.f32 %v2174, %v2208
      %v2225 = vadd.f32 %v2175, %v2209
      %v2226 = vadd.f32 %v2176, %v2210
      %v2227 = vadd.f32 %v2177, %v2211
      %v2228 = vadd.f32 %v2212, %v556
      %v2229 = vadd.f32 %v2213, %v556
      %v2230 = vadd.f32 %v2214, %v561
      %v2231 = vadd.f32 %v2215, %v561
      %v2232 = vadd.f32 %v2216, %v566
      %v2233 = vadd.f32 %v2217, %v566
      %v2234 = vadd.f32 %v2218, %v571
      %v2235 = vadd.f32 %v2219, %v571
      %v2236 = vadd.f32 %v2220, %v576
      %v2237 = vadd.f32 %v2221, %v576
      %v2238 = vadd.f32 %v2222, %v581
      %v2239 = vadd.f32 %v2223, %v581
      %v2240 = vadd.f32 %v2224, %v586
      %v2241 = vadd.f32 %v2225, %v586
      %v2242 = vadd.f32 %v2226, %v591
      %v2243 = vadd.f32 %v2227, %v591
      %v2244 = vtanh.pop %v2228
      %v2245 = vtanh.pop %v2229
      %v2246 = vtanh.pop %v2230
      %v2247 = vtanh.pop %v2231
      %v2248 = vtanh.pop %v2232
      %v2249 = vtanh.pop %v2233
      %v2250 = vtanh.pop %v2234
      %v2251 = vtanh.pop %v2235
      %v2252 = vtanh.pop %v2236
      %v2253 = vtanh.pop %v2237
      %v2254 = vtanh.pop %v2238
      %v2255 = vtanh.pop %v2239
      %v2256 = vtanh.pop %v2240
      %v2257 = vtanh.pop %v2241
      %v2258 = vtanh.pop %v2242
      %v2259 = vtanh.pop %v2243
      %2260 = vmatprep.subr.mxu0 %v2245
      %2261 = vmatpush1.msra.mxu0 %v2244
      %2262 = vmatprep.subr.mxu0 %v2247
      %2263 = vmatpush1.msra.mxu0 %v2246
      %2264 = vmatprep.subr.mxu0 %v2249
      %2265 = vmatpush1.msra.mxu0 %v2248
      %2266 = vmatprep.subr.mxu0 %v2251
      %2267 = vmatpush1.msra.mxu0 %v2250
      %2268 = vmatprep.subr.mxu0 %v2253
      %2269 = vmatpush1.msra.mxu0 %v2252
      %2270 = vmatprep.subr.mxu0 %v2255
      %2271 = vmatpush1.msra.mxu0 %v2254
      %2272 = vmatprep.subr.mxu0 %v2257
      %2273 = vmatpush1.msra.mxu0 %v2256
      %2274 = vmatprep.subr.mxu0 %v2259
      %2275 = vmatpush1.msra.mxu0 %v2258
      %2276 = vmatprep.subr.mxu0 0.0
      %2277 = vmatpush1.msra.mxu0 0.0
      %2278 = vmatprep.subr.mxu0 0.0
      %2279 = vmatpush1.msra.mxu0 0.0
      %2280 = vmatprep.subr.mxu0 0.0
      %2281 = vmatpush1.msra.mxu0 0.0
      %2282 = vmatprep.subr.mxu0 0.0
      %2283 = vmatpush1.msra.mxu0 0.0
      %2284 = vmatprep.subr.mxu0 0.0
      %2285 = vmatpush1.msra.mxu0 0.0
      %2286 = vmatprep.subr.mxu0 0.0
      %2287 = vmatpush1.msra.mxu0 0.0
      %2288 = vmatprep.subr.mxu0 0.0
      %2289 = vmatpush1.msra.mxu0 0.0
      %2290 = vmatprep.subr.mxu0 0.0
      %2291 = vmatpush1.msra.mxu0 0.0
      %2292 = vmatprep.subr.mxu0 0.0
      %2293 = vmatpush1.msra.mxu0 0.0
      %2294 = vmatprep.subr.mxu0 0.0
      %2295 = vmatpush1.msra.mxu0 0.0
      %2296 = vmatprep.subr.mxu0 0.0
      %2297 = vmatpush1.msra.mxu0 0.0
      %2298 = vmatprep.subr.mxu0 0.0
      %2299 = vmatpush1.msra.mxu0 0.0
      %2300 = vmatprep.subr.mxu0 0.0
      %2301 = vmatpush1.msra.mxu0 0.0
      %2302 = vmatprep.subr.mxu0 0.0
      %2303 = vmatpush1.msra.mxu0 0.0
      %2304 = vmatprep.subr.mxu0 0.0
      %2305 = vmatpush1.msra.mxu0 0.0
      %2306 = vmatprep.subr.mxu0 0.0
      %2307 = vmatpush1.msra.mxu0 0.0
      %2308 = vmatprep.subr.mxu0 0.0
      %2309 = vmatpush1.msra.mxu0 0.0
      %2310 = vmatprep.subr.mxu0 0.0
      %2311 = vmatpush1.msra.mxu0 0.0
      %2312 = vmatprep.subr.mxu0 0.0
      %2313 = vmatpush1.msra.mxu0 0.0
      %2314 = vmatprep.subr.mxu0 0.0
      %2315 = vmatpush1.msra.mxu0 0.0
      %2316 = vmatprep.subr.mxu0 0.0
      %2317 = vmatpush1.msra.mxu0 0.0
      %2318 = vmatprep.subr.mxu0 0.0
      %2319 = vmatpush1.msra.mxu0 0.0
      %2320 = vmatprep.subr.mxu0 0.0
      %2321 = vmatpush1.msra.mxu0 0.0
      %2322 = vmatprep.subr.mxu0 0.0
      %2323 = vmatpush1.msra.mxu0 0.0
      %2324 = vmatprep.mubr.f32.mxu0 0.0
      %2325 = vmatmul.mubr.f32.gmra.mrb[0].mxu0 %v667
      %v2326 = vpop.f32.mrb[0].mxu0
      %v2327 = vadd.f32 %v628, %v2326
      %v2328 = vpop.f32.mrb[0].mxu0
      %v2329 = vadd.f32 %v628, %v2328
      %2330 = vmatprep.mubr.f32.mxu0 0.0
      %2331 = vmatmul.mubr.f32.gmra.mrb[0].mxu0 %v670
      %v2332 = vpop.f32.mrb[0].mxu0
      %v2333 = vadd.f32 %v633, %v2332
      %v2334 = vpop.f32.mrb[0].mxu0
      %v2335 = vadd.f32 %v633, %v2334
      %2336 = vmatprep.mubr.f32.mxu0 0.0
      %2337 = vmatmul.mubr.f32.gmra.mrb[0].mxu0 %v673
      %v2338 = vpop.f32.mrb[0].mxu0
      %v2339 = vadd.f32 %v638, %v2338
      %v2340 = vpop.f32.mrb[0].mxu0
      %v2341 = vadd.f32 %v638, %v2340
      %2342 = vmatprep.mubr.f32.mxu0 0.0
      %2343 = vmatmul.mubr.f32.gmra.mrb[0].mxu0 %v676
      %v2344 = vpop.f32.mrb[0].mxu0
      %v2345 = vadd.f32 %v643, %v2344
      %v2346 = vpop.f32.mrb[0].mxu0
      %v2347 = vadd.f32 %v643, %v2346
      %2348 = vmatprep.mubr.f32.mxu0 0.0
      %2349 = vmatmul.mubr.f32.gmra.mrb[0].mxu0 %v679
      %v2350 = vpop.f32.mrb[0].mxu0
      %v2351 = vadd.f32 %v648, %v2350
      %v2352 = vpop.f32.mrb[0].mxu0
      %v2353 = vadd.f32 %v648, %v2352
      %2354 = vmatprep.mubr.f32.mxu0 0.0
      %2355 = vmatmul.mubr.f32.gmra.mrb[0].mxu0 %v682
      %v2356 = vpop.f32.mrb[0].mxu0
      %v2357 = vadd.f32 %v653, %v2356
      %v2358 = vpop.f32.mrb[0].mxu0
      %v2359 = vadd.f32 %v653, %v2358
      %2360 = vmatprep.mubr.f32.mxu0 0.0
      %2361 = vmatmul.mubr.f32.gmra.mrb[0].mxu0 %v685
      %v2362 = vpop.f32.mrb[0].mxu0
      %v2363 = vadd.f32 %v658, %v2362
      %v2364 = vpop.f32.mrb[0].mxu0
      %v2365 = vadd.f32 %v658, %v2364
      %2366 = vmatprep.mubr.f32.mxu0 0.0
      %2367 = vmatmul.mubr.f32.gmra.mrb[0].mxu0 %v688
      %v2368 = vpop.f32.mrb[0].mxu0
      %v2369 = vadd.f32 %v663, %v2368
      %v2370 = vpop.f32.mrb[0].mxu0
      %v2371 = vadd.f32 %v663, %v2370
      %2372 = vdwg.mxu0
      %v2373 = vtanh.pop %v2327
      %v2374 = vtanh.pop %v2329
      %v2375 = vtanh.pop %v2333
      %v2376 = vtanh.pop %v2335
      %v2377 = vtanh.pop %v2339
      %v2378 = vtanh.pop %v2341
      %v2379 = vtanh.pop %v2345
      %v2380 = vtanh.pop %v2347
      %v2381 = vtanh.pop %v2351
      %v2382 = vtanh.pop %v2353
      %v2383 = vtanh.pop %v2357
      %v2384 = vtanh.pop %v2359
      %v2385 = vtanh.pop %v2363
      %v2386 = vtanh.pop %v2365
      %v2387 = vtanh.pop %v2369
      %v2388 = vtanh.pop %v2371
      %v2389 = vadd.f32 %v2373, %v2244
      %v2390 = vadd.f32 %v2374, %v2245
      %v2391 = vadd.f32 %v2375, %v2246
      %v2392 = vadd.f32 %v2376, %v2247
      %v2393 = vadd.f32 %v2377, %v2248
      %v2394 = vadd.f32 %v2378, %v2249
      %v2395 = vadd.f32 %v2379, %v2250
      %v2396 = vadd.f32 %v2380, %v2251
      %v2397 = vadd.f32 %v2381, %v2252
      %v2398 = vadd.f32 %v2382, %v2253
      %v2399 = vadd.f32 %v2383, %v2254
      %v2400 = vadd.f32 %v2384, %v2255
      %v2401 = vadd.f32 %v2385, %v2256
      %v2402 = vadd.f32 %v2386, %v2257
      %v2403 = vadd.f32 %v2387, %v2258
      %v2404 = vadd.f32 %v2388, %v2259
      %2405 = vmatprep.subr.mxu0 %v2390
      %2406 = vmatpush1.msra.mxu0 %v2389
      %2407 = vmatprep.subr.mxu0 %v2392
      %2408 = vmatpush1.msra.mxu0 %v2391
      %2409 = vmatprep.subr.mxu0 %v2394
      %2410 = vmatpush1.msra.mxu0 %v2393
      %2411 = vmatprep.subr.mxu0 %v2396
      %2412 = vmatpush1.msra.mxu0 %v2395
      %2413 = vmatprep.subr.mxu0 %v2398
      %2414 = vmatpush1.msra.mxu0 %v2397
      %2415 = vmatprep.subr.mxu0 %v2400
      %2416 = vmatpush1.msra.mxu0 %v2399
      %2417 = vmatprep.subr.mxu0 %v2402
      %2418 = vmatpush1.msra.mxu0 %v2401
      %2419 = vmatprep.subr.mxu0 %v2404
      %2420 = vmatpush1.msra.mxu0 %v2403
      %2421 = vmatprep.subr.mxu0 0.0
      %2422 = vmatpush1.msra.mxu0 0.0
      %2423 = vmatprep.subr.mxu0 0.0
      %2424 = vmatpush1.msra.mxu0 0.0
      %2425 = vmatprep.subr.mxu0 0.0
      %2426 = vmatpush1.msra.mxu0 0.0
      %2427 = vmatprep.subr.mxu0 0.0
      %2428 = vmatpush1.msra.mxu0 0.0
      %2429 = vmatprep.subr.mxu0 0.0
      %2430 = vmatpush1.msra.mxu0 0.0
      %2431 = vmatprep.subr.mxu0 0.0
      %2432 = vmatpush1.msra.mxu0 0.0
      %2433 = vmatprep.subr.mxu0 0.0
      %2434 = vmatpush1.msra.mxu0 0.0
      %2435 = vmatprep.subr.mxu0 0.0
      %2436 = vmatpush1.msra.mxu0 0.0
      %2437 = vmatprep.subr.mxu0 0.0
      %2438 = vmatpush1.msra.mxu0 0.0
      %2439 = vmatprep.subr.mxu0 0.0
      %2440 = vmatpush1.msra.mxu0 0.0
      %2441 = vmatprep.subr.mxu0 0.0
      %2442 = vmatpush1.msra.mxu0 0.0
      %2443 = vmatprep.subr.mxu0 0.0
      %2444 = vmatpush1.msra.mxu0 0.0
      %2445 = vmatprep.subr.mxu0 0.0
      %2446 = vmatpush1.msra.mxu0 0.0
      %2447 = vmatprep.subr.mxu0 0.0
      %2448 = vmatpush1.msra.mxu0 0.0
      %2449 = vmatprep.subr.mxu0 0.0
      %2450 = vmatpush1.msra.mxu0 0.0
      %2451 = vmatprep.subr.mxu0 0.0
      %2452 = vmatpush1.msra.mxu0 0.0
      %2453 = vmatprep.subr.mxu0 0.0
      %2454 = vmatpush1.msra.mxu0 0.0
      %2455 = vmatprep.subr.mxu0 0.0
      %2456 = vmatpush1.msra.mxu0 0.0
      %2457 = vmatprep.subr.mxu0 0.0
      %2458 = vmatpush1.msra.mxu0 0.0
      %2459 = vmatprep.subr.mxu0 0.0
      %2460 = vmatpush1.msra.mxu0 0.0
      %2461 = vmatprep.subr.mxu0 0.0
      %2462 = vmatpush1.msra.mxu0 0.0
      %2463 = vmatprep.subr.mxu0 0.0
      %2464 = vmatpush1.msra.mxu0 0.0
      %2465 = vmatprep.subr.mxu0 0.0
      %2466 = vmatpush1.msra.mxu0 0.0
      %2467 = vmatprep.subr.mxu0 0.0
      %2468 = vmatpush1.msra.mxu0 0.0
      %2469 = vmatprep.mubr.f32.mxu0 0.0
      %2470 = vmatmul.mubr.f32.gmra.mrb[0].mxu0 %v876
      %v2471 = vpop.f32.mrb[0].mxu0
      %v2472 = vadd.f32 %v838, %v2471
      %v2473 = vpop.f32.mrb[0].mxu0
      %v2474 = vadd.f32 %v838, %v2473
      %2475 = vmatprep.mubr.f32.mxu0 0.0
      %2476 = vmatmul.mubr.f32.gmra.mrb[0].mxu0 %v879
      %v2477 = vpop.f32.mrb[0].mxu0
      %v2478 = vadd.f32 %v843, %v2477
      %v2479 = vpop.f32.mrb[0].mxu0
      %v2480 = vadd.f32 %v843, %v2479
      %2481 = vmatprep.mubr.f32.mxu0 0.0
      %2482 = vmatmul.mubr.f32.gmra.mrb[0].mxu0 %v882
      %v2483 = vpop.f32.mrb[0].mxu0
      %v2484 = vadd.f32 %v848, %v2483
      %v2485 = vpop.f32.mrb[0].mxu0
      %v2486 = vadd.f32 %v848, %v2485
      %2487 = vmatprep.mubr.f32.mxu0 0.0
      %2488 = vmatmul.mubr.f32.gmra.mrb[0].mxu0 %v885
      %v2489 = vpop.f32.mrb[0].mxu0
      %v2490 = vadd.f32 %v853, %v2489
      %v2491 = vpop.f32.mrb[0].mxu0
      %v2492 = vadd.f32 %v853, %v2491
      %2493 = vmatprep.mubr.f32.mxu0 0.0
      %2494 = vmatmul.mubr.f32.gmra.mrb[0].mxu0 %v888
      %v2495 = vpop.f32.mrb[0].mxu0
      %v2496 = vadd.f32 %v858, %v2495
      %v2497 = vpop.f32.mrb[0].mxu0
      %v2498 = vadd.f32 %v858, %v2497
      %2499 = vmatprep.mubr.f32.mxu0 0.0
      %2500 = vmatmul.mubr.f32.gmra.mrb[0].mxu0 %v891
      %v2501 = vpop.f32.mrb[0].mxu0
      %v2502 = vadd.f32 %v863, %v2501
      %v2503 = vpop.f32.mrb[0].mxu0
      %v2504 = vadd.f32 %v863, %v2503
      %2505 = vmatprep.mubr.f32.mxu0 0.0
      %2506 = vmatmul.mubr.f32.gmra.mrb[0].mxu0 %v894
      %v2507 = vpop.f32.mrb[0].mxu0
      %v2508 = vadd.f32 %v868, %v2507
      %v2509 = vpop.f32.mrb[0].mxu0
      %v2510 = vadd.f32 %v868, %v2509
      %2511 = vmatprep.mubr.f32.mxu0 0.0
      %2512 = vmatmul.mubr.f32.gmra.mrb[0].mxu0 %v897
      %v2513 = vpop.f32.mrb[0].mxu0
      %v2514 = vadd.f32 %v873, %v2513
      %v2515 = vpop.f32.mrb[0].mxu0
      %v2516 = vadd.f32 %v873, %v2515
      %2517 = vdwg.mxu0
      %v2518 = vtanh.pop %v2472
      %v2519 = vtanh.pop %v2474
      %v2520 = vtanh.pop %v2478
      %v2521 = vtanh.pop %v2480
      %v2522 = vtanh.pop %v2484
      %v2523 = vtanh.pop %v2486
      %v2524 = vtanh.pop %v2490
      %v2525 = vtanh.pop %v2492
      %v2526 = vtanh.pop %v2496
      %v2527 = vtanh.pop %v2498
      %v2528 = vtanh.pop %v2502
      %v2529 = vtanh.pop %v2504
      %v2530 = vtanh.pop %v2508
      %v2531 = vtanh.pop %v2510
      %v2532 = vtanh.pop %v2514
      %v2533 = vtanh.pop %v2516
      %v2534 = vadd.f32 %v2518, %v2389
      %v2535 = vadd.f32 %v2519, %v2390
      %v2536 = vadd.f32 %v2520, %v2391
      %v2537 = vadd.f32 %v2521, %v2392
      %v2538 = vadd.f32 %v2522, %v2393
      %v2539 = vadd.f32 %v2523, %v2394
      %v2540 = vadd.f32 %v2524, %v2395
      %v2541 = vadd.f32 %v2525, %v2396
      %v2542 = vadd.f32 %v2526, %v2397
      %v2543 = vadd.f32 %v2527, %v2398
      %v2544 = vadd.f32 %v2528, %v2399
      %v2545 = vadd.f32 %v2529, %v2400
      %v2546 = vadd.f32 %v2530, %v2401
      %v2547 = vadd.f32 %v2531, %v2402
      %v2548 = vadd.f32 %v2532, %v2403
      %v2549 = vadd.f32 %v2533, %v2404
      %2550 = vmatprep.subr.mxu0 %v2535
      %2551 = vmatpush1.msra.mxu0 %v2534
      %2552 = vmatprep.subr.mxu0 %v2537
      %2553 = vmatpush1.msra.mxu0 %v2536
      %2554 = vmatprep.subr.mxu0 %v2539
      %2555 = vmatpush1.msra.mxu0 %v2538
      %2556 = vmatprep.subr.mxu0 %v2541
      %2557 = vmatpush1.msra.mxu0 %v2540
      %2558 = vmatprep.subr.mxu0 %v2543
      %2559 = vmatpush1.msra.mxu0 %v2542
      %2560 = vmatprep.subr.mxu0 %v2545
      %2561 = vmatpush1.msra.mxu0 %v2544
      %2562 = vmatprep.subr.mxu0 %v2547
      %2563 = vmatpush1.msra.mxu0 %v2546
      %2564 = vmatprep.subr.mxu0 %v2549
      %2565 = vmatpush1.msra.mxu0 %v2548
      %2566 = vmatprep.subr.mxu0 0.0
      %2567 = vmatpush1.msra.mxu0 0.0
      %2568 = vmatprep.subr.mxu0 0.0
      %2569 = vmatpush1.msra.mxu0 0.0
      %2570 = vmatprep.subr.mxu0 0.0
      %2571 = vmatpush1.msra.mxu0 0.0
      %2572 = vmatprep.subr.mxu0 0.0
      %2573 = vmatpush1.msra.mxu0 0.0
      %2574 = vmatprep.subr.mxu0 0.0
      %2575 = vmatpush1.msra.mxu0 0.0
      %2576 = vmatprep.subr.mxu0 0.0
      %2577 = vmatpush1.msra.mxu0 0.0
      %2578 = vmatprep.subr.mxu0 0.0
      %2579 = vmatpush1.msra.mxu0 0.0
      %2580 = vmatprep.subr.mxu0 0.0
      %2581 = vmatpush1.msra.mxu0 0.0
      %2582 = vmatprep.subr.mxu0 0.0
      %2583 = vmatpush1.msra.mxu0 0.0
      %2584 = vmatprep.subr.mxu0 0.0
      %2585 = vmatpush1.msra.mxu0 0.0
      %2586 = vmatprep.subr.mxu0 0.0
      %2587 = vmatpush1.msra.mxu0 0.0
      %2588 = vmatprep.subr.mxu0 0.0
      %2589 = vmatpush1.msra.mxu0 0.0
      %2590 = vmatprep.subr.mxu0 0.0
      %2591 = vmatpush1.msra.mxu0 0.0
      %2592 = vmatprep.subr.mxu0 0.0
      %2593 = vmatpush1.msra.mxu0 0.0
      %2594 = vmatprep.subr.mxu0 0.0
      %2595 = vmatpush1.msra.mxu0 0.0
      %2596 = vmatprep.subr.mxu0 0.0
      %2597 = vmatpush1.msra.mxu0 0.0
      %2598 = vmatprep.subr.mxu0 0.0
      %2599 = vmatpush1.msra.mxu0 0.0
      %2600 = vmatprep.subr.mxu0 0.0
      %2601 = vmatpush1.msra.mxu0 0.0
      %2602 = vmatprep.subr.mxu0 0.0
      %2603 = vmatpush1.msra.mxu0 0.0
      %2604 = vmatprep.subr.mxu0 0.0
      %2605 = vmatpush1.msra.mxu0 0.0
      %2606 = vmatprep.subr.mxu0 0.0
      %2607 = vmatpush1.msra.mxu0 0.0
      %2608 = vmatprep.subr.mxu0 0.0
      %2609 = vmatpush1.msra.mxu0 0.0
      %2610 = vmatprep.subr.mxu0 0.0
      %2611 = vmatpush1.msra.mxu0 0.0
      %2612 = vmatprep.subr.mxu0 0.0
      %2613 = vmatpush1.msra.mxu0 0.0
      %2614 = vmatprep.mubr.f32.mxu0 0.0
      %2615 = vmatmul.mubr.f32.gmra.mrb[0].mxu0 %v1045
      %v2616 = vpop.f32.mrb[0].mxu0
      %v2617 = vadd.f32 %v394, %v2616
      %v2618 = vpop.f32.mrb[0].mxu0
      %v2619 = vadd.f32 %v394, %v2618
      %2620 = vdwg.mxu0
      %v2623 = vcombine.low %v2617, %v2619
      %v2625 = vunpack.c.l.s4 1966171168
      %v2626 = vunpack.c.0.s8 %v2625
      %v2627 = vlaneseq
      %v2628 = vshrl.u32 %v2627, 7
      %v2629 = vsub.s32 %v2626, %v2628
      %v2630 = vrot.slane %v2623, %v2629
      %v2632 = vunpack.c.l.s4 1966171168
      %v2633 = vunpack.c.0.s8 %v2632
      %v2634 = vlaneseq
      %v2635 = vshrl.u32 %v2634, 7
      %v2636 = vsub.s32 %v2633, %v2635
      %v2637 = vrot.slane %v2630, %v2636
      %s2639 = scalar_lea.vmem %s334, 6
      %2640 = vst.msk [vmem:[%s2639] sm:$0x3] %vm1139, %v2637
      %s2641 = smul.u32 8, %s22
      %p2642 = scmp.lt.s32.totalorder %s2641, 15
      %s2643 = scalar_select %p2642, %s2641, 15
      %s2644 = scalar_lea.vmem %s9, %s2643
      // Predicated region
      $region57: #{pinn_forward.1} parent=55 // pred_check
        %p2645 = pneg %p234
      $region58: #{pinn_forward.1} parent=55 // pred_check_branch
        %2647 = sbr.rel (%p2645) target = $region60
      $region59: #{pinn_forward.1} parent=55 // pred_region
        %s2648 = smul.u32 8, %s22
      $region60: #{pinn_forward.1} parent=55 // pred_fallthru
        _
    $region56: #{pinn_forward.1} parent=5 // pred_fallthru
      _
    %p2649 = scmp.le.s32.totalorder 2, %s17
    // Predicated region
    $region61: #{pinn_forward.1} parent=5 // pred_check
      %p2650 = pneg %p2649
    $region62: #{pinn_forward.1} parent=5 // pred_check_branch
      %2652 = sbr.rel (%p2650) target = $region64
    $region63: #{pinn_forward.1} parent=5 // pred_region
      %s2653 = ssub.s32 %s17, 2
      // Predicated region
      $region65: #{pinn_forward.1} parent=63 // pred_check
        %p2654 = pneg %p240
      $region66: #{pinn_forward.1} parent=63 // pred_check_branch
        %2656 = sbr.rel (%p2654) target = $region68
      $region67: #{pinn_forward.1} parent=63 // pred_region
        %s2657 = smul.u32 8, %s23
        %p2658 = scmp.lt.s32.totalorder %s2657, 15
        %s2659 = scalar_select %p2658, %s2657, 15
        %s2660 = scalar_lea.vmem %s9, %s2659
      $region68: #{pinn_forward.1} parent=63 // pred_fallthru
        _
    $region64: #{pinn_forward.1} parent=5 // pred_fallthru
      _
  $region6: #{pinn_forward.1} parent=0 // loop_footer
    %s21 = sadd.s32 1, %s17
  $region7: #{pinn_forward.1} parent=0 // loop_footer_branch
    %16 = sbr.rel target = $region3
  $region8: #{pinn_forward.1} parent=0 // loop_exit
    _

</llo_original>
